<compile_context>
chip_gen: v6e
topology: v6e:2x2x1
jax: 0.10.0
libtpu: 0.0.40
codegen_flags: <defaults>
</compile_context>

<pallas_src>
import functools

import jax
import jax.numpy as jnp
from jax import lax
from jax.experimental import pallas as pl
from jax.experimental.pallas import tpu as pltpu


_LOG2E = 1.4426950408889634


def _vmem_limit_bytes():
    """Generation-aware VMEM budget (~85% of physical per-core capacity)."""
    cap = 128 * 1024 * 1024
    try:
        info = pltpu.get_tpu_info()
        cap = int(getattr(info, "vmem_capacity_bytes", cap))
    except Exception:
        pass
    return int(cap * 0.85)


def _pick_tile(n, candidates):
    """Largest candidate tile that evenly divides n (falls back to n)."""
    for t in candidates:
        if t <= n and n % t == 0:
            return t
    return n


# --------------------------------------------------------------------------
# Kernel 1: fused QKV projection, writing (B, H, T, D) bf16 outputs.
# --------------------------------------------------------------------------
def _qkv_proj_kernel(x_ref, w_ref, b_ref, q_ref, k_ref, v_ref, *,
                     num_heads, head_dim, embed_dim):
    x = x_ref[0].astype(jnp.bfloat16)                              # (tt, E)
    qkv = (jnp.dot(x, w_ref[...], preferred_element_type=jnp.float32)
           + b_ref[...]).astype(q_ref.dtype)                       # (tt, 3E) bf16
    # Split heads once per row tile (not per k-step) while storing.
    for h in range(num_heads):
        lo = h * head_dim
        q_ref[0, h] = qkv[:, lo:lo + head_dim]
        k_ref[0, h] = qkv[:, embed_dim + lo:embed_dim + lo + head_dim]
        v_ref[0, h] = qkv[:, 2 * embed_dim + lo:2 * embed_dim + lo + head_dim]


def _qkv_projections(x, p, *, num_heads):
    B, T, E = x.shape
    D = E // num_heads
    tt = _pick_tile(T, (2048, 1024, 512, 256, 128, 64, 32, 16, 8))
    # Keep the (tt, 3E) f32 intermediate modest.
    while tt > 8 and tt * 3 * E * 4 > 12 * 1024 * 1024 and T % (tt // 2) == 0:
        tt //= 2

    kernel = functools.partial(_qkv_proj_kernel, num_heads=num_heads,
                               head_dim=D, embed_dim=E)
    out_sds = jax.ShapeDtypeStruct((B, num_heads, T, D), jnp.bfloat16)
    head_spec = pl.BlockSpec((1, num_heads, tt, D), lambda b, ti: (b, 0, ti, 0))

    q, k, v = pl.pallas_call(
        kernel,
        out_shape=(out_sds, out_sds, out_sds),
        grid_spec=pltpu.PrefetchScalarGridSpec(
            num_scalar_prefetch=0,
            grid=(B, T // tt),
            in_specs=[
                pl.BlockSpec((1, tt, E), lambda b, ti: (b, ti, 0)),     # x
                pl.BlockSpec((E, 3 * E), lambda b, ti: (0, 0)),         # wqkv
                pl.BlockSpec((1, 3 * E), lambda b, ti: (0, 0)),         # bqkv
            ],
            out_specs=(head_spec, head_spec, head_spec),
        ),
        compiler_params=pltpu.CompilerParams(
            dimension_semantics=("parallel", "parallel"),
            vmem_limit_bytes=_vmem_limit_bytes()),
    )(x, p['wqkv'], p['bqkv'])
    return q, k, v


# --------------------------------------------------------------------------
# Kernel 2: attention with resident K/V, one-pass softmax, fused out_proj.
# --------------------------------------------------------------------------
def _attn_kernel(q_ref, k_ref, v_ref, wo_ref, bo_ref, o_ref, acc_ref):
    h = pl.program_id(2)

    @pl.when(h == 0)
    def _init():
        acc_ref[...] = jnp.zeros_like(acc_ref)

    q = q_ref[0, 0]                                   # (tq, D) bf16
    k = k_ref[0, 0]                                   # (T,  D) bf16
    v = v_ref[0, 0]                                   # (T,  D) bf16

    # Scores in log2 space (D^-0.5 * log2(e) folded into q weights/bias).
    s = lax.dot_general(q, k, (((1,), (1,)), ((), ())),
                        preferred_element_type=jnp.float32)        # (tq, T)
    m = jnp.max(s, axis=-1, keepdims=True)
    e = jnp.exp2(s - m)                                            # EUP slot
    l = jnp.sum(e, axis=-1, keepdims=True)
    pv = jnp.dot(e.astype(jnp.bfloat16), v,
                 preferred_element_type=jnp.float32)               # (tq, D)
    ctx = (pv * pl.reciprocal(l, approx=True)).astype(jnp.bfloat16)

    # Fused out_proj: per-head (tq, D) x (D, E) accumulated over heads.
    acc_ref[...] += jnp.dot(ctx, wo_ref[0],
                            preferred_element_type=jnp.float32)    # (tq, E)

    @pl.when(h == pl.num_programs(2) - 1)
    def _finalize():
        o_ref[0] = (acc_ref[...] + bo_ref[...]).astype(o_ref.dtype)


def _attention(q, k, v, p, *, out_dtype):
    B, H, T, D = q.shape
    E = H * D
    tq = _pick_tile(T, (512, 256, 128, 64, 32, 16, 8))
    # Keep the (tq, T) f32 score tile bounded.
    while tq > 8 and tq * T * 4 > 8 * 1024 * 1024 and T % (tq // 2) == 0:
        tq //= 2

    return pl.pallas_call(
        _attn_kernel,
        out_shape=jax.ShapeDtypeStruct((B, T, E), out_dtype),
        grid_spec=pltpu.PrefetchScalarGridSpec(
            num_scalar_prefetch=0,
            grid=(B, T // tq, H),
            in_specs=[
                pl.BlockSpec((1, 1, tq, D), lambda b, qi, h: (b, h, qi, 0)),  # q
                pl.BlockSpec((1, 1, T, D), lambda b, qi, h: (b, h, 0, 0)),    # k
                pl.BlockSpec((1, 1, T, D), lambda b, qi, h: (b, h, 0, 0)),    # v
                pl.BlockSpec((1, D, E), lambda b, qi, h: (h, 0, 0)),          # wo[h]
                pl.BlockSpec((1, E), lambda b, qi, h: (0, 0)),                # bo
            ],
            out_specs=pl.BlockSpec((1, tq, E), lambda b, qi, h: (b, qi, 0)),
            scratch_shapes=[pltpu.VMEM((tq, E), jnp.float32)],     # out-proj acc
        ),
        compiler_params=pltpu.CompilerParams(
            dimension_semantics=("parallel", "parallel", "arbitrary"),
            vmem_limit_bytes=_vmem_limit_bytes()),
    )(q, k, v, p['wo'], p['bo'])


# --------------------------------------------------------------------------
# Weight preparation (one-time, host side) + jitted forward.
# --------------------------------------------------------------------------
def prepare_params(params, *, num_heads):
    """Transpose (out,in)->(in,out), concat QKV weights, fold D^-0.5*log2(e)
    into q_proj, reshape out_proj to per-head (H, D, E), cast weights bf16."""
    E = params['q_w'].shape[0]
    assert E % num_heads == 0, "embed_dim must be divisible by num_heads"
    D = E // num_heads
    scale = (D ** -0.5) * _LOG2E
    f32 = jnp.float32

    wq = params['q_w'].astype(f32).T * scale
    wk = params['k_w'].astype(f32).T
    wv = params['v_w'].astype(f32).T
    wqkv = jnp.concatenate([wq, wk, wv], axis=1).astype(jnp.bfloat16)   # (E, 3E)
    bqkv = jnp.concatenate([params['q_b'].astype(f32) * scale,
                            params['k_b'].astype(f32),
                            params['v_b'].astype(f32)]).reshape(1, 3 * E)
    wo = params['o_w'].astype(f32).T.reshape(num_heads, D, E).astype(jnp.bfloat16)
    bo = params['o_b'].astype(f32).reshape(1, E)
    return {'wqkv': wqkv, 'bqkv': bqkv, 'wo': wo, 'bo': bo}


@functools.partial(jax.jit, static_argnames=("num_heads",))
def wav2vec2_attention(hidden_states, prepared, *, num_heads):
    """hidden_states: (B, T, E) in model dtype.  prepared: prepare_params()."""
    q, k, v = _qkv_projections(hidden_states, prepared, num_heads=num_heads)
    return _attention(q, k, v, prepared, out_dtype=hidden_states.dtype)


# --------------------------------------------------------------------------
# Pure-JAX reference (replicates the PyTorch forward, self-attn path).
# --------------------------------------------------------------------------
def _reference(hidden_states, params, *, num_heads):
    B, T, E = hidden_states.shape
    D = E // num_heads
    scaling = D ** (-0.5)

    def lin(x, w, b):
        return x @ w.T + b

    q = lin(hidden_states, params['q_w'], params['q_b']) * scaling
    k = lin(hidden_states, params['k_w'], params['k_b'])
    v = lin(hidden_states, params['v_w'], params['v_b'])

    def shape(t):  # (B, T, E) -> (B, H, T, D)
        return t.reshape(B, T, num_heads, D).transpose(0, 2, 1, 3)

    qh, kh, vh = shape(q), shape(k), shape(v)
    attn = jnp.einsum('bhqd,bhkd->bhqk', qh, kh)
    attn = jax.nn.softmax(attn, axis=-1)
    ctx = jnp.einsum('bhqk,bhkd->bhqd', attn, vh)
    ctx = ctx.transpose(0, 2, 1, 3).reshape(B, T, E)
    return lin(ctx, params['o_w'], params['o_b'])


if __name__ == "__main__":
    B, T, E, H = 2, 8, 32, 4   # batch, seq, embed_dim, num_heads

    key = jax.random.PRNGKey(0)
    keys = jax.random.split(key, 9)
    params = {
        'q_w': jax.random.normal(keys[0], (E, E), jnp.float32) * 0.1,
        'q_b': jax.random.normal(keys[1], (E,), jnp.float32) * 0.1,
        'k_w': jax.random.normal(keys[2], (E, E), jnp.float32) * 0.1,
        'k_b': jax.random.normal(keys[3], (E,), jnp.float32) * 0.1,
        'v_w': jax.random.normal(keys[4], (E, E), jnp.float32) * 0.1,
        'v_b': jax.random.normal(keys[5], (E,), jnp.float32) * 0.1,
        'o_w': jax.random.normal(keys[6], (E, E), jnp.float32) * 0.1,
        'o_b': jax.random.normal(keys[7], (E,), jnp.float32) * 0.1,
    }
    hidden_states = jax.random.normal(keys[8], (B, T, E), jnp.float32)

    prepared = prepare_params(params, num_heads=H)        # hoisted, one-time
    out = wav2vec2_attention(hidden_states, prepared, num_heads=H)
    out = jax.block_until_ready(out)

    ref = _reference(hidden_states, params, num_heads=H)
    assert out.shape == (B, T, E)
    assert out.dtype == hidden_states.dtype
    max_err = jnp.max(jnp.abs(out.astype(jnp.float32) - ref))
    # bf16 weights + bf16 Q/K/V intermediates + approx reciprocal -> loosened
    # (inference) tolerance.
    assert jnp.allclose(out.astype(jnp.float32), ref, atol=4e-2, rtol=4e-2), (
        f"max abs err = {max_err}")

    print("KERNEL_OK")
</pallas_src>

<mosaic_0001>
module attributes {stable_mosaic.version = 11 : i64} {
  func.func @_qkv_proj_kernel(%arg0: i32, %arg1: i32, %arg2: memref<1x8x32xf32, #tpu.memory_space<vmem>>, %arg3: memref<32x96xbf16, #tpu.memory_space<vmem>>, %arg4: memref<1x96xf32, #tpu.memory_space<vmem>>, %arg5: memref<1x4x8x8xbf16, #tpu.memory_space<vmem>>, %arg6: memref<1x4x8x8xbf16, #tpu.memory_space<vmem>>, %arg7: memref<1x4x8x8xbf16, #tpu.memory_space<vmem>>) attributes {dimension_semantics = [#tpu.dimension_semantics<parallel>, #tpu.dimension_semantics<parallel>], iteration_bounds = array<i64: 2, 1>, scalar_prefetch = 0 : i64, scratch_operands = 0 : i64, tpu.core_type = #tpu.core_type<tc>, window_params = [{transform_indices = @transform_0, window_bounds = array<i64: 1, 8, 32>}, {pipeline_mode = #tpu.pipeline_mode<synchronous>, transform_indices = @transform_1, window_bounds = array<i64: 32, 96>}, {pipeline_mode = #tpu.pipeline_mode<synchronous>, transform_indices = @transform_2, window_bounds = array<i64: 1, 96>}, {transform_indices = @transform_3, window_bounds = array<i64: 1, 4, 8, 8>}, {transform_indices = @transform_4, window_bounds = array<i64: 1, 4, 8, 8>}, {transform_indices = @transform_5, window_bounds = array<i64: 1, 4, 8, 8>}]} {
    %c0 = arith.constant 0 : index
    %c0_0 = arith.constant 0 : index
    %c0_1 = arith.constant 0 : index
    %0 = vector.load %arg2[%c0, %c0_0, %c0_1] : memref<1x8x32xf32, #tpu.memory_space<vmem>>, vector<1x8x32xf32>
    %1 = vector.shape_cast %0 : vector<1x8x32xf32> to vector<8x32xf32>
    %2 = arith.truncf %1 : vector<8x32xf32> to vector<8x32xbf16>
    %c0_2 = arith.constant 0 : index
    %c0_3 = arith.constant 0 : index
    %3 = vector.load %arg3[%c0_2, %c0_3] : memref<32x96xbf16, #tpu.memory_space<vmem>>, vector<32x96xbf16>
    %cst = arith.constant dense<0.000000e+00> : vector<8x96xf32>
    %4 = tpu.matmul %2, %3, %cst {dimension_numbers = #tpu.dot_dimension_numbers<[1], [0], [0], [1], [0, 0, 1, 1], [], []>} : vector<8x32xbf16>, vector<32x96xbf16>, vector<8x96xf32> -> vector<8x96xf32>
    %c0_4 = arith.constant 0 : index
    %c0_5 = arith.constant 0 : index
    %5 = vector.load %arg4[%c0_4, %c0_5] : memref<1x96xf32, #tpu.memory_space<vmem>>, vector<1x96xf32>
    %6 = vector.broadcast %5 : vector<1x96xf32> to vector<8x96xf32>
    %7 = arith.addf %4, %6 : vector<8x96xf32>
    %8 = arith.truncf %7 : vector<8x96xf32> to vector<8x96xbf16>
    %9 = vector.extract_strided_slice %8 {offsets = [0, 0], sizes = [8, 8], strides = [1, 1]} : vector<8x96xbf16> to vector<8x8xbf16>
    %c0_6 = arith.constant 0 : index
    %c0_7 = arith.constant 0 : index
    %c0_8 = arith.constant 0 : index
    %c0_9 = arith.constant 0 : index
    %10 = vector.load %arg5[%c0_6, %c0_7, %c0_8, %c0_9] : memref<1x4x8x8xbf16, #tpu.memory_space<vmem>>, vector<1x1x8x8xbf16>
    %11 = vector.shape_cast %10 : vector<1x1x8x8xbf16> to vector<8x8xbf16>
    %12 = vector.shape_cast %9 : vector<8x8xbf16> to vector<1x1x8x8xbf16>
    tpu.vector_store %arg5[%c0_6, %c0_7, %c0_8, %c0_9], %12 {strides = array<i32>} : memref<1x4x8x8xbf16, #tpu.memory_space<vmem>>, vector<1x1x8x8xbf16>,
    %13 = vector.extract_strided_slice %8 {offsets = [0, 32], sizes = [8, 8], strides = [1, 1]} : vector<8x96xbf16> to vector<8x8xbf16>
    %c0_10 = arith.constant 0 : index
    %c0_11 = arith.constant 0 : index
    %c0_12 = arith.constant 0 : index
    %c0_13 = arith.constant 0 : index
    %14 = vector.load %arg6[%c0_10, %c0_11, %c0_12, %c0_13] : memref<1x4x8x8xbf16, #tpu.memory_space<vmem>>, vector<1x1x8x8xbf16>
    %15 = vector.shape_cast %14 : vector<1x1x8x8xbf16> to vector<8x8xbf16>
    %16 = vector.shape_cast %13 : vector<8x8xbf16> to vector<1x1x8x8xbf16>
    tpu.vector_store %arg6[%c0_10, %c0_11, %c0_12, %c0_13], %16 {strides = array<i32>} : memref<1x4x8x8xbf16, #tpu.memory_space<vmem>>, vector<1x1x8x8xbf16>,
    %17 = vector.extract_strided_slice %8 {offsets = [0, 64], sizes = [8, 8], strides = [1, 1]} : vector<8x96xbf16> to vector<8x8xbf16>
    %c0_14 = arith.constant 0 : index
    %c0_15 = arith.constant 0 : index
    %c0_16 = arith.constant 0 : index
    %c0_17 = arith.constant 0 : index
    %18 = vector.load %arg7[%c0_14, %c0_15, %c0_16, %c0_17] : memref<1x4x8x8xbf16, #tpu.memory_space<vmem>>, vector<1x1x8x8xbf16>
    %19 = vector.shape_cast %18 : vector<1x1x8x8xbf16> to vector<8x8xbf16>
    %20 = vector.shape_cast %17 : vector<8x8xbf16> to vector<1x1x8x8xbf16>
    tpu.vector_store %arg7[%c0_14, %c0_15, %c0_16, %c0_17], %20 {strides = array<i32>} : memref<1x4x8x8xbf16, #tpu.memory_space<vmem>>, vector<1x1x8x8xbf16>,
    %21 = vector.extract_strided_slice %8 {offsets = [0, 8], sizes = [8, 8], strides = [1, 1]} : vector<8x96xbf16> to vector<8x8xbf16>
    %c0_18 = arith.constant 0 : index
    %c1 = arith.constant 1 : index
    %c0_19 = arith.constant 0 : index
    %c0_20 = arith.constant 0 : index
    %22 = vector.load %arg5[%c0_18, %c1, %c0_19, %c0_20] : memref<1x4x8x8xbf16, #tpu.memory_space<vmem>>, vector<1x1x8x8xbf16>
    %23 = vector.shape_cast %22 : vector<1x1x8x8xbf16> to vector<8x8xbf16>
    %24 = vector.shape_cast %21 : vector<8x8xbf16> to vector<1x1x8x8xbf16>
    tpu.vector_store %arg5[%c0_18, %c1, %c0_19, %c0_20], %24 {strides = array<i32>} : memref<1x4x8x8xbf16, #tpu.memory_space<vmem>>, vector<1x1x8x8xbf16>,
    %25 = vector.extract_strided_slice %8 {offsets = [0, 40], sizes = [8, 8], strides = [1, 1]} : vector<8x96xbf16> to vector<8x8xbf16>
    %c0_21 = arith.constant 0 : index
    %c1_22 = arith.constant 1 : index
    %c0_23 = arith.constant 0 : index
    %c0_24 = arith.constant 0 : index
    %26 = vector.load %arg6[%c0_21, %c1_22, %c0_23, %c0_24] : memref<1x4x8x8xbf16, #tpu.memory_space<vmem>>, vector<1x1x8x8xbf16>
    %27 = vector.shape_cast %26 : vector<1x1x8x8xbf16> to vector<8x8xbf16>
    %28 = vector.shape_cast %25 : vector<8x8xbf16> to vector<1x1x8x8xbf16>
    tpu.vector_store %arg6[%c0_21, %c1_22, %c0_23, %c0_24], %28 {strides = array<i32>} : memref<1x4x8x8xbf16, #tpu.memory_space<vmem>>, vector<1x1x8x8xbf16>,
    %29 = vector.extract_strided_slice %8 {offsets = [0, 72], sizes = [8, 8], strides = [1, 1]} : vector<8x96xbf16> to vector<8x8xbf16>
    %c0_25 = arith.constant 0 : index
    %c1_26 = arith.constant 1 : index
    %c0_27 = arith.constant 0 : index
    %c0_28 = arith.constant 0 : index
    %30 = vector.load %arg7[%c0_25, %c1_26, %c0_27, %c0_28] : memref<1x4x8x8xbf16, #tpu.memory_space<vmem>>, vector<1x1x8x8xbf16>
    %31 = vector.shape_cast %30 : vector<1x1x8x8xbf16> to vector<8x8xbf16>
    %32 = vector.shape_cast %29 : vector<8x8xbf16> to vector<1x1x8x8xbf16>
    tpu.vector_store %arg7[%c0_25, %c1_26, %c0_27, %c0_28], %32 {strides = array<i32>} : memref<1x4x8x8xbf16, #tpu.memory_space<vmem>>, vector<1x1x8x8xbf16>,
    %33 = vector.extract_strided_slice %8 {offsets = [0, 16], sizes = [8, 8], strides = [1, 1]} : vector<8x96xbf16> to vector<8x8xbf16>
    %c0_29 = arith.constant 0 : index
    %c2 = arith.constant 2 : index
    %c0_30 = arith.constant 0 : index
    %c0_31 = arith.constant 0 : index
    %34 = vector.load %arg5[%c0_29, %c2, %c0_30, %c0_31] : memref<1x4x8x8xbf16, #tpu.memory_space<vmem>>, vector<1x1x8x8xbf16>
    %35 = vector.shape_cast %34 : vector<1x1x8x8xbf16> to vector<8x8xbf16>
    %36 = vector.shape_cast %33 : vector<8x8xbf16> to vector<1x1x8x8xbf16>
    tpu.vector_store %arg5[%c0_29, %c2, %c0_30, %c0_31], %36 {strides = array<i32>} : memref<1x4x8x8xbf16, #tpu.memory_space<vmem>>, vector<1x1x8x8xbf16>,
    %37 = vector.extract_strided_slice %8 {offsets = [0, 48], sizes = [8, 8], strides = [1, 1]} : vector<8x96xbf16> to vector<8x8xbf16>
    %c0_32 = arith.constant 0 : index
    %c2_33 = arith.constant 2 : index
    %c0_34 = arith.constant 0 : index
    %c0_35 = arith.constant 0 : index
    %38 = vector.load %arg6[%c0_32, %c2_33, %c0_34, %c0_35] : memref<1x4x8x8xbf16, #tpu.memory_space<vmem>>, vector<1x1x8x8xbf16>
    %39 = vector.shape_cast %38 : vector<1x1x8x8xbf16> to vector<8x8xbf16>
    %40 = vector.shape_cast %37 : vector<8x8xbf16> to vector<1x1x8x8xbf16>
    tpu.vector_store %arg6[%c0_32, %c2_33, %c0_34, %c0_35], %40 {strides = array<i32>} : memref<1x4x8x8xbf16, #tpu.memory_space<vmem>>, vector<1x1x8x8xbf16>,
    %41 = vector.extract_strided_slice %8 {offsets = [0, 80], sizes = [8, 8], strides = [1, 1]} : vector<8x96xbf16> to vector<8x8xbf16>
    %c0_36 = arith.constant 0 : index
    %c2_37 = arith.constant 2 : index
    %c0_38 = arith.constant 0 : index
    %c0_39 = arith.constant 0 : index
    %42 = vector.load %arg7[%c0_36, %c2_37, %c0_38, %c0_39] : memref<1x4x8x8xbf16, #tpu.memory_space<vmem>>, vector<1x1x8x8xbf16>
    %43 = vector.shape_cast %42 : vector<1x1x8x8xbf16> to vector<8x8xbf16>
    %44 = vector.shape_cast %41 : vector<8x8xbf16> to vector<1x1x8x8xbf16>
    tpu.vector_store %arg7[%c0_36, %c2_37, %c0_38, %c0_39], %44 {strides = array<i32>} : memref<1x4x8x8xbf16, #tpu.memory_space<vmem>>, vector<1x1x8x8xbf16>,
    %45 = vector.extract_strided_slice %8 {offsets = [0, 24], sizes = [8, 8], strides = [1, 1]} : vector<8x96xbf16> to vector<8x8xbf16>
    %c0_40 = arith.constant 0 : index
    %c3 = arith.constant 3 : index
    %c0_41 = arith.constant 0 : index
    %c0_42 = arith.constant 0 : index
    %46 = vector.load %arg5[%c0_40, %c3, %c0_41, %c0_42] : memref<1x4x8x8xbf16, #tpu.memory_space<vmem>>, vector<1x1x8x8xbf16>
    %47 = vector.shape_cast %46 : vector<1x1x8x8xbf16> to vector<8x8xbf16>
    %48 = vector.shape_cast %45 : vector<8x8xbf16> to vector<1x1x8x8xbf16>
    tpu.vector_store %arg5[%c0_40, %c3, %c0_41, %c0_42], %48 {strides = array<i32>} : memref<1x4x8x8xbf16, #tpu.memory_space<vmem>>, vector<1x1x8x8xbf16>,
    %49 = vector.extract_strided_slice %8 {offsets = [0, 56], sizes = [8, 8], strides = [1, 1]} : vector<8x96xbf16> to vector<8x8xbf16>
    %c0_43 = arith.constant 0 : index
    %c3_44 = arith.constant 3 : index
    %c0_45 = arith.constant 0 : index
    %c0_46 = arith.constant 0 : index
    %50 = vector.load %arg6[%c0_43, %c3_44, %c0_45, %c0_46] : memref<1x4x8x8xbf16, #tpu.memory_space<vmem>>, vector<1x1x8x8xbf16>
    %51 = vector.shape_cast %50 : vector<1x1x8x8xbf16> to vector<8x8xbf16>
    %52 = vector.shape_cast %49 : vector<8x8xbf16> to vector<1x1x8x8xbf16>
    tpu.vector_store %arg6[%c0_43, %c3_44, %c0_45, %c0_46], %52 {strides = array<i32>} : memref<1x4x8x8xbf16, #tpu.memory_space<vmem>>, vector<1x1x8x8xbf16>,
    %53 = vector.extract_strided_slice %8 {offsets = [0, 88], sizes = [8, 8], strides = [1, 1]} : vector<8x96xbf16> to vector<8x8xbf16>
    %c0_47 = arith.constant 0 : index
    %c3_48 = arith.constant 3 : index
    %c0_49 = arith.constant 0 : index
    %c0_50 = arith.constant 0 : index
    %54 = vector.load %arg7[%c0_47, %c3_48, %c0_49, %c0_50] : memref<1x4x8x8xbf16, #tpu.memory_space<vmem>>, vector<1x1x8x8xbf16>
    %55 = vector.shape_cast %54 : vector<1x1x8x8xbf16> to vector<8x8xbf16>
    %56 = vector.shape_cast %53 : vector<8x8xbf16> to vector<1x1x8x8xbf16>
    tpu.vector_store %arg7[%c0_47, %c3_48, %c0_49, %c0_50], %56 {strides = array<i32>} : memref<1x4x8x8xbf16, #tpu.memory_space<vmem>>, vector<1x1x8x8xbf16>,
    return
  }
  func.func @transform_0(%arg0: i32, %arg1: i32) -> (i32, i32, i32) {
    %c0_i32 = arith.constant 0 : i32
    %c0_i32_0 = arith.constant 0 : i32
    return %arg0, %arg1, %c0_i32 : i32, i32, i32
  }
  func.func @transform_1(%arg0: i32, %arg1: i32) -> (i32, i32) {
    %c0_i32 = arith.constant 0 : i32
    %c0_i32_0 = arith.constant 0 : i32
    %c0_i32_1 = arith.constant 0 : i32
    return %c0_i32, %c0_i32_0 : i32, i32
  }
  func.func @transform_2(%arg0: i32, %arg1: i32) -> (i32, i32) {
    %c0_i32 = arith.constant 0 : i32
    %c0_i32_0 = arith.constant 0 : i32
    %c0_i32_1 = arith.constant 0 : i32
    return %c0_i32, %c0_i32_0 : i32, i32
  }
  func.func @transform_3(%arg0: i32, %arg1: i32) -> (i32, i32, i32, i32) {
    %c0_i32 = arith.constant 0 : i32
    %c0_i32_0 = arith.constant 0 : i32
    %c0_i32_1 = arith.constant 0 : i32
    return %arg0, %c0_i32, %arg1, %c0_i32_0 : i32, i32, i32, i32
  }
  func.func @transform_4(%arg0: i32, %arg1: i32) -> (i32, i32, i32, i32) {
    %c0_i32 = arith.constant 0 : i32
    %c0_i32_0 = arith.constant 0 : i32
    %c0_i32_1 = arith.constant 0 : i32
    return %arg0, %c0_i32, %arg1, %c0_i32_0 : i32, i32, i32, i32
  }
  func.func @transform_5(%arg0: i32, %arg1: i32) -> (i32, i32, i32, i32) {
    %c0_i32 = arith.constant 0 : i32
    %c0_i32_0 = arith.constant 0 : i32
    %c0_i32_1 = arith.constant 0 : i32
    return %arg0, %c0_i32, %arg1, %c0_i32_0 : i32, i32, i32, i32
  }
}

module attributes {stable_mosaic.version = 11 : i64} {
  func.func @_attn_kernel(%arg0: i32, %arg1: i32, %arg2: i32, %arg3: memref<1x1x8x8xbf16, #tpu.memory_space<vmem>>, %arg4: memref<1x1x8x8xbf16, #tpu.memory_space<vmem>>, %arg5: memref<1x1x8x8xbf16, #tpu.memory_space<vmem>>, %arg6: memref<1x8x32xbf16, #tpu.memory_space<vmem>>, %arg7: memref<1x32xf32, #tpu.memory_space<vmem>>, %arg8: memref<1x8x32xf32, #tpu.memory_space<vmem>>, %arg9: memref<8x32xf32, #tpu.memory_space<vmem>>) attributes {dimension_semantics = [#tpu.dimension_semantics<parallel>, #tpu.dimension_semantics<parallel>, #tpu.dimension_semantics<arbitrary>], iteration_bounds = array<i64: 2, 1, 4>, scalar_prefetch = 0 : i64, scratch_operands = 1 : i64, tpu.core_type = #tpu.core_type<tc>, window_params = [{transform_indices = @transform_0, window_bounds = array<i64: 1, 1, 8, 8>}, {transform_indices = @transform_1, window_bounds = array<i64: 1, 1, 8, 8>}, {transform_indices = @transform_2, window_bounds = array<i64: 1, 1, 8, 8>}, {transform_indices = @transform_3, window_bounds = array<i64: 1, 8, 32>}, {pipeline_mode = #tpu.pipeline_mode<synchronous>, transform_indices = @transform_4, window_bounds = array<i64: 1, 32>}, {transform_indices = @transform_5, window_bounds = array<i64: 1, 8, 32>}]} {
    %c0_i32 = arith.constant 0 : i32
    %0 = arith.cmpi eq, %arg2, %c0_i32 : i32
    %1 = arith.extui %0 : i1 to i32
    %c0_i32_0 = arith.constant 0 : i32
    %2 = arith.cmpi ne, %1, %c0_i32_0 : i32
    scf.if %2 {
      %cst_24 = arith.constant 0.000000e+00 : f32
      %32 = vector.broadcast %cst_24 : f32 to vector<8x32xf32>
      %c0_25 = arith.constant 0 : index
      %c0_26 = arith.constant 0 : index
      %33 = vector.load %arg9[%c0_25, %c0_26] : memref<8x32xf32, #tpu.memory_space<vmem>>, vector<8x32xf32>
      tpu.vector_store %arg9[%c0_25, %c0_26], %32 {strides = array<i32>} : memref<8x32xf32, #tpu.memory_space<vmem>>, vector<8x32xf32>,
    } else {
    }
    %c0 = arith.constant 0 : index
    %c0_1 = arith.constant 0 : index
    %c0_2 = arith.constant 0 : index
    %c0_3 = arith.constant 0 : index
    %3 = vector.load %arg3[%c0, %c0_1, %c0_2, %c0_3] : memref<1x1x8x8xbf16, #tpu.memory_space<vmem>>, vector<1x1x8x8xbf16>
    %4 = vector.shape_cast %3 : vector<1x1x8x8xbf16> to vector<8x8xbf16>
    %c0_4 = arith.constant 0 : index
    %c0_5 = arith.constant 0 : index
    %c0_6 = arith.constant 0 : index
    %c0_7 = arith.constant 0 : index
    %5 = vector.load %arg4[%c0_4, %c0_5, %c0_6, %c0_7] : memref<1x1x8x8xbf16, #tpu.memory_space<vmem>>, vector<1x1x8x8xbf16>
    %6 = vector.shape_cast %5 : vector<1x1x8x8xbf16> to vector<8x8xbf16>
    %c0_8 = arith.constant 0 : index
    %c0_9 = arith.constant 0 : index
    %c0_10 = arith.constant 0 : index
    %c0_11 = arith.constant 0 : index
    %7 = vector.load %arg5[%c0_8, %c0_9, %c0_10, %c0_11] : memref<1x1x8x8xbf16, #tpu.memory_space<vmem>>, vector<1x1x8x8xbf16>
    %8 = vector.shape_cast %7 : vector<1x1x8x8xbf16> to vector<8x8xbf16>
    %cst = arith.constant dense<0.000000e+00> : vector<8x8xf32>
    %9 = tpu.matmul %4, %6, %cst {dimension_numbers = #tpu.dot_dimension_numbers<[1], [1], [0], [0], [0, 0, 1, 0], [], []>} : vector<8x8xbf16>, vector<8x8xbf16>, vector<8x8xf32> -> vector<8x8xf32>
    %cst_12 = arith.constant dense<0xFF800000> : vector<8xf32>
    %10 = vector.multi_reduction <maximumf>, %9, %cst_12 [1] : vector<8x8xf32> to vector<8xf32>
    %11 = vector.shape_cast %10 : vector<8xf32> to vector<8x1xf32>
    %12 = vector.broadcast %11 : vector<8x1xf32> to vector<8x8xf32>
    %13 = arith.subf %9, %12 : vector<8x8xf32>
    %14 = math.exp2 %13 : vector<8x8xf32>
    %cst_13 = arith.constant dense<0.000000e+00> : vector<8xf32>
    %15 = vector.multi_reduction <add>, %14, %cst_13 [1] : vector<8x8xf32> to vector<8xf32>
    %16 = vector.shape_cast %15 : vector<8xf32> to vector<8x1xf32>
    %17 = arith.truncf %14 : vector<8x8xf32> to vector<8x8xbf16>
    %cst_14 = arith.constant dense<0.000000e+00> : vector<8x8xf32>
    %18 = tpu.matmul %17, %8, %cst_14 {dimension_numbers = #tpu.dot_dimension_numbers<[1], [0], [0], [1], [0, 0, 1, 1], [], []>} : vector<8x8xbf16>, vector<8x8xbf16>, vector<8x8xf32> -> vector<8x8xf32>
    %19 = tpu.reciprocal %16 {approx = true} : vector<8x1xf32> -> vector<8x1xf32>
    %20 = vector.broadcast %19 : vector<8x1xf32> to vector<8x8xf32>
    %21 = arith.mulf %18, %20 : vector<8x8xf32>
    %22 = arith.truncf %21 : vector<8x8xf32> to vector<8x8xbf16>
    %c0_15 = arith.constant 0 : index
    %c0_16 = arith.constant 0 : index
    %23 = vector.load %arg9[%c0_15, %c0_16] : memref<8x32xf32, #tpu.memory_space<vmem>>, vector<8x32xf32>
    %c0_17 = arith.constant 0 : index
    %c0_18 = arith.constant 0 : index
    %c0_19 = arith.constant 0 : index
    %24 = vector.load %arg6[%c0_17, %c0_18, %c0_19] : memref<1x8x32xbf16, #tpu.memory_space<vmem>>, vector<1x8x32xbf16>
    %25 = vector.shape_cast %24 : vector<1x8x32xbf16> to vector<8x32xbf16>
    %cst_20 = arith.constant dense<0.000000e+00> : vector<8x32xf32>
    %26 = tpu.matmul %22, %25, %cst_20 {dimension_numbers = #tpu.dot_dimension_numbers<[1], [0], [0], [1], [0, 0, 1, 1], [], []>} : vector<8x8xbf16>, vector<8x32xbf16>, vector<8x32xf32> -> vector<8x32xf32>
    %27 = arith.addf %23, %26 : vector<8x32xf32>
    %c0_21 = arith.constant 0 : index
    %c0_22 = arith.constant 0 : index
    %28 = vector.load %arg9[%c0_21, %c0_22] : memref<8x32xf32, #tpu.memory_space<vmem>>, vector<8x32xf32>
    tpu.vector_store %arg9[%c0_21, %c0_22], %27 {strides = array<i32>} : memref<8x32xf32, #tpu.memory_space<vmem>>, vector<8x32xf32>,
    %c3_i32 = arith.constant 3 : i32
    %29 = arith.cmpi eq, %arg2, %c3_i32 : i32
    %30 = arith.extui %29 : i1 to i32
    %c0_i32_23 = arith.constant 0 : i32
    %31 = arith.cmpi ne, %30, %c0_i32_23 : i32
    scf.if %31 {
      %c0_24 = arith.constant 0 : index
      %c0_25 = arith.constant 0 : index
      %32 = vector.load %arg9[%c0_24, %c0_25] : memref<8x32xf32, #tpu.memory_space<vmem>>, vector<8x32xf32>
      %c0_26 = arith.constant 0 : index
      %c0_27 = arith.constant 0 : index
      %33 = vector.load %arg7[%c0_26, %c0_27] : memref<1x32xf32, #tpu.memory_space<vmem>>, vector<1x32xf32>
      %34 = vector.broadcast %33 : vector<1x32xf32> to vector<8x32xf32>
      %35 = arith.addf %32, %34 : vector<8x32xf32>
      %c0_28 = arith.constant 0 : index
      %c0_29 = arith.constant 0 : index
      %c0_30 = arith.constant 0 : index
      %36 = vector.load %arg8[%c0_28, %c0_29, %c0_30] : memref<1x8x32xf32, #tpu.memory_space<vmem>>, vector<1x8x32xf32>
      %37 = vector.shape_cast %36 : vector<1x8x32xf32> to vector<8x32xf32>
      %38 = vector.shape_cast %35 : vector<8x32xf32> to vector<1x8x32xf32>
      tpu.vector_store %arg8[%c0_28, %c0_29, %c0_30], %38 {strides = array<i32>} : memref<1x8x32xf32, #tpu.memory_space<vmem>>, vector<1x8x32xf32>,
    } else {
    }
    return
  }
  func.func @transform_0(%arg0: i32, %arg1: i32, %arg2: i32) -> (i32, i32, i32, i32) {
    %c0_i32 = arith.constant 0 : i32
    %c0_i32_0 = arith.constant 0 : i32
    return %arg0, %arg2, %arg1, %c0_i32 : i32, i32, i32, i32
  }
  func.func @transform_1(%arg0: i32, %arg1: i32, %arg2: i32) -> (i32, i32, i32, i32) {
    %c0_i32 = arith.constant 0 : i32
    %c0_i32_0 = arith.constant 0 : i32
    %c0_i32_1 = arith.constant 0 : i32
    return %arg0, %arg2, %c0_i32, %c0_i32_0 : i32, i32, i32, i32
  }
  func.func @transform_2(%arg0: i32, %arg1: i32, %arg2: i32) -> (i32, i32, i32, i32) {
    %c0_i32 = arith.constant 0 : i32
    %c0_i32_0 = arith.constant 0 : i32
    %c0_i32_1 = arith.constant 0 : i32
    return %arg0, %arg2, %c0_i32, %c0_i32_0 : i32, i32, i32, i32
  }
  func.func @transform_3(%arg0: i32, %arg1: i32, %arg2: i32) -> (i32, i32, i32) {
    %c0_i32 = arith.constant 0 : i32
    %c0_i32_0 = arith.constant 0 : i32
    %c0_i32_1 = arith.constant 0 : i32
    return %arg2, %c0_i32, %c0_i32_0 : i32, i32, i32
  }
  func.func @transform_4(%arg0: i32, %arg1: i32, %arg2: i32) -> (i32, i32) {
    %c0_i32 = arith.constant 0 : i32
    %c0_i32_0 = arith.constant 0 : i32
    %c0_i32_1 = arith.constant 0 : i32
    return %c0_i32, %c0_i32_0 : i32, i32
  }
  func.func @transform_5(%arg0: i32, %arg1: i32, %arg2: i32) -> (i32, i32, i32) {
    %c0_i32 = arith.constant 0 : i32
    %c0_i32_0 = arith.constant 0 : i32
    return %arg0, %arg1, %c0_i32 : i32, i32, i32
  }
}

</mosaic_0001>

<llo_original>
// kernel: wav2vec2_attention.3
$region0: #{wav2vec2_attention.3}
  #allocation0 [shape = 'u32[]', space=smem, size = 0x4, offset = 0x4, fixed_abs, tag = 'smem constant byte address 0x4 - core index']
  #allocation1 [shape = 'u32[144,128]{1,0:T(1,128)}', space=vmem, size = 0x12000, scoped, tag = 'internal scratch']
  #allocation2 [shape = 'f32[8,32]{1,0:T(8,128)}', space=vmem, size = 0x1000, scoped, tag = 'scratch operand']
  %s0 = inlined_call_operand.vmem [shape: bf16[2,4,8,8], index: 0, kind: input, shape index: {}]
  %s1 = inlined_call_operand.vmem [shape: bf16[2,4,8,8], index: 1, kind: input, shape index: {}]
  %s2 = inlined_call_operand.vmem [shape: bf16[2,4,8,8], index: 2, kind: input, shape index: {}]
  %s3 = inlined_call_operand.vmem [shape: bf16[4,8,32], index: 3, kind: input, shape index: {}]
  %s4 = inlined_call_operand.vmem [shape: f32[1,32], index: 4, kind: input, shape index: {}]
  %s5 = inlined_call_operand.hbm [shape: f32[2,8,32], index: 5, kind: output, shape index: {}]
  %s6 = sld [smem:[#allocation0]]
  $region61: #{wav2vec2_attention.3} parent=0
    _
  %s8 = ssub.s32 1, %s6
  %s9 = scalar_select 0, %s8, %s6
  $region1: #{wav2vec2_attention.3} parent=0
    #allocation3 [shape = 'u8[8192]{0}', space=vmem, size = 0x2000, scoped, tag = 'output window, operand 0']
    #allocation4 [shape = 's32[2]{0}', space=sflag, size = 0x8, scoped, tag = 'scoped memory for wav2vec2_attention.3']
    %10 = vsyncpa [#allocation4], 0
    %s11 = scalar_lea.sflag [#allocation4], 1
    %12 = vsyncpa %s11, 0
    loop: start=0, step=1, limit=10
    $region2: #{wav2vec2_attention.3} parent=1 // loop_pre_header
      _
    $region3: #{wav2vec2_attention.3} parent=1 // loop_header
      %s14 = sphi 0, %s18
      %p15 = scmp.ge.s32.totalorder %s14, 10
      %s21 = sphi 0, %s40
      %s22 = sphi 0, %s36
      %s23 = sphi 0, %s32
      %s24 = sphi 0, %s21
      %s25 = sphi 0, %s22
      %s26 = sphi 0, %s23
      %s27 = sphi 0, %s24
      %s28 = sphi 0, %s25
      %s29 = sphi 0, %s26
      %s47 = sphi 0, %s49
      %s50 = sphi 0, %s47
      %s51 = sphi 0, %s50
      %s67 = sphi 0, %s51
      %s75 = sphi 0, %s77
      %s78 = sphi 0, %s75
      %s79 = sphi 0, %s78
      %s95 = sphi 0, %s79
      %s103 = sphi 0, %s105
      %s106 = sphi 0, %s103
      %s107 = sphi 0, %s106
      %s123 = sphi 0, %s107
      %s129 = sphi 0, %s131
      %s132 = sphi 0, %s129
      %s133 = sphi 0, %s132
      %s149 = sphi 0, %s133
      %s153 = sphi 0, %s153
      %s155 = sphi 0, %s153
      %s156 = sphi 0, %s155
      %s170 = sphi 0, %s156
      %s178 = sphi 0, %s180
      %s181 = sphi 0, %s178
      %s182 = sphi 0, %s181
      %s198 = sphi 0, %s182
    $region4: #{wav2vec2_attention.3} parent=1 // loop_header_branch
      %17 = sbr.rel (%p15) target = $region8
    $region5: #{wav2vec2_attention.3} parent=1 // loop_body
      %s19 = ssub.s32 %s14, 1
      %s20 = ssub.s32 %s14, 2
      %s30 = sadd.s32 1, %s23
      %p31 = scmp.ge.s32.totalorder %s30, 4
      %s32 = scalar_select %p31, 0, %s30
      %s33 = sadd.s32 1, %s22
      %s34 = scalar_select %p31, %s33, %s22
      %p35 = scmp.ge.s32.totalorder %s34, 1
      %s36 = scalar_select %p35, 0, %s34
      %s37 = sadd.s32 1, %s21
      %s38 = scalar_select %p35, %s37, %s21
      %p39 = scmp.ge.s32.totalorder %s38, 2
      %s40 = scalar_select %p39, 0, %s38
      %s41 = ssub.s32 %s21, %s40
      %s42 = ssub.s32 %s23, %s32
      %s43 = sor.u32 %s41, %s42
      %s44 = ssub.s32 %s22, %s36
      %s45 = sor.u32 %s43, %s44
      %p46 = scmp.eq.s32.totalorder %s45, 0
      %s48 = sadd.s32 %s47, 1
      %s49 = scalar_select %p46, %s47, %s48
      %p52 = pneg %p46
      %p53 = scmp.eq.s32.totalorder %s14, 7
      %p54 = por %p52, %p53
      %p55 = scmp.ne.s32.totalorder %s47, %s50
      %p56 = scmp.eq.s32.totalorder %s14, 0
      %p57 = por %p55, %p56
      %p58 = scmp.ne.s32.totalorder %s47, %s50
      %p59 = scmp.eq.s32.totalorder %s19, 7
      %p60 = por %p58, %p59
      %p61 = scmp.ne.s32.totalorder %s50, %s51
      %p62 = scmp.eq.s32.totalorder %s19, 0
      %p63 = por %p61, %p62
      %p64 = scmp.ne.s32.totalorder %s50, %s51
      %p65 = scmp.eq.s32.totalorder %s20, 7
      %p66 = por %p64, %p65
      %p68 = scmp.ne.s32.totalorder %s51, %s67
      %p69 = scmp.eq.s32.totalorder %s20, 0
      %p70 = por %p68, %p69
      %s71 = ssub.s32 %s21, %s40
      %s72 = ssub.s32 %s23, %s32
      %s73 = sor.u32 %s71, %s72
      %p74 = scmp.eq.s32.totalorder %s73, 0
      %s76 = sadd.s32 %s75, 1
      %s77 = scalar_select %p74, %s75, %s76
      %p80 = pneg %p74
      %p81 = scmp.eq.s32.totalorder %s14, 7
      %p82 = por %p80, %p81
      %p83 = scmp.ne.s32.totalorder %s75, %s78
      %p84 = scmp.eq.s32.totalorder %s14, 0
      %p85 = por %p83, %p84
      %p86 = scmp.ne.s32.totalorder %s75, %s78
      %p87 = scmp.eq.s32.totalorder %s19, 7
      %p88 = por %p86, %p87
      %p89 = scmp.ne.s32.totalorder %s78, %s79
      %p90 = scmp.eq.s32.totalorder %s19, 0
      %p91 = por %p89, %p90
      %p92 = scmp.ne.s32.totalorder %s78, %s79
      %p93 = scmp.eq.s32.totalorder %s20, 7
      %p94 = por %p92, %p93
      %p96 = scmp.ne.s32.totalorder %s79, %s95
      %p97 = scmp.eq.s32.totalorder %s20, 0
      %p98 = por %p96, %p97
      %s99 = ssub.s32 %s21, %s40
      %s100 = ssub.s32 %s23, %s32
      %s101 = sor.u32 %s99, %s100
      %p102 = scmp.eq.s32.totalorder %s101, 0
      %s104 = sadd.s32 %s103, 1
      %s105 = scalar_select %p102, %s103, %s104
      %p108 = pneg %p102
      %p109 = scmp.eq.s32.totalorder %s14, 7
      %p110 = por %p108, %p109
      %p111 = scmp.ne.s32.totalorder %s103, %s106
      %p112 = scmp.eq.s32.totalorder %s14, 0
      %p113 = por %p111, %p112
      %p114 = scmp.ne.s32.totalorder %s103, %s106
      %p115 = scmp.eq.s32.totalorder %s19, 7
      %p116 = por %p114, %p115
      %p117 = scmp.ne.s32.totalorder %s106, %s107
      %p118 = scmp.eq.s32.totalorder %s19, 0
      %p119 = por %p117, %p118
      %p120 = scmp.ne.s32.totalorder %s106, %s107
      %p121 = scmp.eq.s32.totalorder %s20, 7
      %p122 = por %p120, %p121
      %p124 = scmp.ne.s32.totalorder %s107, %s123
      %p125 = scmp.eq.s32.totalorder %s20, 0
      %p126 = por %p124, %p125
      %s127 = ssub.s32 %s23, %s32
      %p128 = scmp.eq.s32.totalorder %s127, 0
      %s130 = sadd.s32 %s129, 1
      %s131 = scalar_select %p128, %s129, %s130
      %p134 = pneg %p128
      %p135 = scmp.eq.s32.totalorder %s14, 7
      %p136 = por %p134, %p135
      %p137 = scmp.ne.s32.totalorder %s129, %s132
      %p138 = scmp.eq.s32.totalorder %s14, 0
      %p139 = por %p137, %p138
      %p140 = scmp.ne.s32.totalorder %s129, %s132
      %p141 = scmp.eq.s32.totalorder %s19, 7
      %p142 = por %p140, %p141
      %p143 = scmp.ne.s32.totalorder %s132, %s133
      %p144 = scmp.eq.s32.totalorder %s19, 0
      %p145 = por %p143, %p144
      %p146 = scmp.ne.s32.totalorder %s132, %s133
      %p147 = scmp.eq.s32.totalorder %s20, 7
      %p148 = por %p146, %p147
      %p150 = scmp.ne.s32.totalorder %s133, %s149
      %p151 = scmp.eq.s32.totalorder %s20, 0
      %p152 = por %p150, %p151
      %s154 = sadd.s32 %s153, 1
      %p157 = scmp.eq.s32.totalorder %s14, 7
      %p158 = scmp.ne.s32.totalorder %s153, %s155
      %p159 = scmp.eq.s32.totalorder %s14, 0
      %p160 = por %p158, %p159
      %p161 = scmp.ne.s32.totalorder %s153, %s155
      %p162 = scmp.eq.s32.totalorder %s19, 7
      %p163 = por %p161, %p162
      %p164 = scmp.ne.s32.totalorder %s155, %s156
      %p165 = scmp.eq.s32.totalorder %s19, 0
      %p166 = por %p164, %p165
      %p167 = scmp.ne.s32.totalorder %s155, %s156
      %p168 = scmp.eq.s32.totalorder %s20, 7
      %p169 = por %p167, %p168
      %p171 = scmp.ne.s32.totalorder %s156, %s170
      %p172 = scmp.eq.s32.totalorder %s20, 0
      %p173 = por %p171, %p172
      %s174 = ssub.s32 %s21, %s40
      %s175 = ssub.s32 %s22, %s36
      %s176 = sor.u32 %s174, %s175
      %p177 = scmp.eq.s32.totalorder %s176, 0
      %s179 = sadd.s32 %s178, 1
      %s180 = scalar_select %p177, %s178, %s179
      %p183 = pneg %p177
      %p184 = scmp.eq.s32.totalorder %s14, 7
      %p185 = por %p183, %p184
      %p186 = scmp.ne.s32.totalorder %s178, %s181
      %p187 = scmp.eq.s32.totalorder %s14, 0
      %p188 = por %p186, %p187
      %p189 = scmp.ne.s32.totalorder %s178, %s181
      %p190 = scmp.eq.s32.totalorder %s19, 7
      %p191 = por %p189, %p190
      %p192 = scmp.ne.s32.totalorder %s181, %s182
      %p193 = scmp.eq.s32.totalorder %s19, 0
      %p194 = por %p192, %p193
      %p195 = scmp.ne.s32.totalorder %s181, %s182
      %p196 = scmp.eq.s32.totalorder %s20, 7
      %p197 = por %p195, %p196
      %p199 = scmp.ne.s32.totalorder %s182, %s198
      %p200 = scmp.eq.s32.totalorder %s20, 0
      %p201 = por %p199, %p200
      %p202 = scmp.le.s32.totalorder 1, %s14
      %p203 = scmp.lt.s32.totalorder %s14, 9
      %p204 = pnand %p202, %p203
      %p205 = pneg %p204
      // Predicated region
      $region9: #{wav2vec2_attention.3} parent=5 // pred_check
        _
      $region10: #{wav2vec2_attention.3} parent=5 // pred_check_branch
        %207 = sbr.rel (%p204) target = $region12
      $region11: #{wav2vec2_attention.3} parent=5 // pred_region
        %s208 = ssub.s32 %s14, 1
        // Predicated region
        $region13: #{wav2vec2_attention.3} parent=11 // pred_check
          %p209 = pneg %p166
        $region14: #{wav2vec2_attention.3} parent=11 // pred_check_branch
          %211 = sbr.rel (%p209) target = $region16
        $region15: #{wav2vec2_attention.3} parent=11 // pred_region
          _
        $region16: #{wav2vec2_attention.3} parent=11 // pred_fallthru
          _
      $region12: #{wav2vec2_attention.3} parent=5 // pred_fallthru
        _
      %p212 = scmp.lt.s32.totalorder %s14, 8
      // Predicated region
      $region17: #{wav2vec2_attention.3} parent=5 // pred_check
        %p213 = pneg %p212
      $region18: #{wav2vec2_attention.3} parent=5 // pred_check_branch
        %215 = sbr.rel (%p213) target = $region20
      $region19: #{wav2vec2_attention.3} parent=5 // pred_region
        // Predicated region
        $region21: #{wav2vec2_attention.3} parent=19 // pred_check
          %p216 = pneg %p57
        $region22: #{wav2vec2_attention.3} parent=19 // pred_check_branch
          %218 = sbr.rel (%p216) target = $region24
        $region23: #{wav2vec2_attention.3} parent=19 // pred_region
          %p219 = scmp.lt.s32.totalorder %s21, 1
          %s220 = scalar_select %p219, %s21, 1
          %p221 = scmp.lt.s32.totalorder %s23, 3
          %s222 = scalar_select %p221, %s23, 3
          %p223 = scmp.lt.s32.totalorder %s22, 0
          %s224 = scalar_select %p223, %s22, 0
          %s225 = sadd.s32 %s224, %s222
          %s226 = smul.addr %s220, 4
          %s227 = sadd.s32 %s225, %s226
          %s228 = smul.addr %s227, 4
          %s229 = scalar_lea.vmem %s0, %s228
        $region24: #{wav2vec2_attention.3} parent=19 // pred_fallthru
          _
        // Predicated region
        $region25: #{wav2vec2_attention.3} parent=19 // pred_check
          %p230 = pneg %p85
        $region26: #{wav2vec2_attention.3} parent=19 // pred_check_branch
          %232 = sbr.rel (%p230) target = $region28
        $region27: #{wav2vec2_attention.3} parent=19 // pred_region
          %p233 = scmp.lt.s32.totalorder %s21, 1
          %s234 = scalar_select %p233, %s21, 1
          %p235 = scmp.lt.s32.totalorder %s23, 3
          %s236 = scalar_select %p235, %s23, 3
          %s237 = smul.addr %s234, 4
          %s238 = sadd.s32 %s236, %s237
          %s239 = smul.addr %s238, 4
          %s240 = scalar_lea.vmem %s1, %s239
        $region28: #{wav2vec2_attention.3} parent=19 // pred_fallthru
          _
        // Predicated region
        $region29: #{wav2vec2_attention.3} parent=19 // pred_check
          %p241 = pneg %p113
        $region30: #{wav2vec2_attention.3} parent=19 // pred_check_branch
          %243 = sbr.rel (%p241) target = $region32
        $region31: #{wav2vec2_attention.3} parent=19 // pred_region
          %p244 = scmp.lt.s32.totalorder %s21, 1
          %s245 = scalar_select %p244, %s21, 1
          %p246 = scmp.lt.s32.totalorder %s23, 3
          %s247 = scalar_select %p246, %s23, 3
          %s248 = smul.addr %s245, 4
          %s249 = sadd.s32 %s247, %s248
          %s250 = smul.addr %s249, 4
          %s251 = scalar_lea.vmem %s2, %s250
        $region32: #{wav2vec2_attention.3} parent=19 // pred_fallthru
          _
        // Predicated region
        $region33: #{wav2vec2_attention.3} parent=19 // pred_check
          %p252 = pneg %p139
        $region34: #{wav2vec2_attention.3} parent=19 // pred_check_branch
          %254 = sbr.rel (%p252) target = $region36
        $region35: #{wav2vec2_attention.3} parent=19 // pred_region
          %p255 = scmp.lt.s32.totalorder %s23, 3
          %s256 = scalar_select %p255, %s23, 3
          %s257 = smul.addr %s256, 4
          %s258 = scalar_lea.vmem %s3, %s257
        $region36: #{wav2vec2_attention.3} parent=19 // pred_fallthru
          _
      $region20: #{wav2vec2_attention.3} parent=5 // pred_fallthru
        _
      %p259 = scmp.le.s32.totalorder 1, %s14
      %p260 = scmp.lt.s32.totalorder %s14, 9
      %p261 = pnand %p259, %p260
      %p262 = pneg %p261
      // Predicated region
      $region37: #{wav2vec2_attention.3} parent=5 // pred_check
        _
      $region38: #{wav2vec2_attention.3} parent=5 // pred_check_branch
        %264 = sbr.rel (%p261) target = $region40
      $region39: #{wav2vec2_attention.3} parent=5 // pred_region
        %s265 = ssub.s32 %s14, 1
        %p266 = scmp.lt.s32.totalorder %s24, 1
        %s267 = scalar_select %p266, %s24, 1
        %p268 = scmp.lt.s32.totalorder %s26, 3
        %s269 = scalar_select %p268, %s26, 3
        %p270 = scmp.lt.s32.totalorder %s25, 0
        %s271 = scalar_select %p270, %s25, 0
        %s272 = sadd.s32 %s271, %s269
        %s273 = smul.addr %s267, 4
        %s274 = sadd.s32 %s272, %s273
        %s275 = smul.addr %s274, 4
        %s276 = scalar_lea.vmem %s0, %s275
        %p277 = pneg %p63
        %p278 = pneg %p60
        %p279 = scmp.lt.s32.totalorder %s24, 1
        %s280 = scalar_select %p279, %s24, 1
        %p281 = scmp.lt.s32.totalorder %s26, 3
        %s282 = scalar_select %p281, %s26, 3
        %s283 = smul.addr %s280, 4
        %s284 = sadd.s32 %s282, %s283
        %s285 = smul.addr %s284, 4
        %s286 = scalar_lea.vmem %s1, %s285
        %p287 = pneg %p91
        %p288 = pneg %p88
        %p289 = scmp.lt.s32.totalorder %s24, 1
        %s290 = scalar_select %p289, %s24, 1
        %p291 = scmp.lt.s32.totalorder %s26, 3
        %s292 = scalar_select %p291, %s26, 3
        %s293 = smul.addr %s290, 4
        %s294 = sadd.s32 %s292, %s293
        %s295 = smul.addr %s294, 4
        %s296 = scalar_lea.vmem %s2, %s295
        %p297 = pneg %p119
        %p298 = pneg %p116
        %p299 = scmp.lt.s32.totalorder %s26, 3
        %s300 = scalar_select %p299, %s26, 3
        %s301 = smul.addr %s300, 4
        %s302 = scalar_lea.vmem %s3, %s301
        %p303 = pneg %p145
        %p304 = pneg %p142
        %p305 = pneg %p166
        %p306 = pneg %p163
        %p307 = pneg %p194
        %p308 = pneg %p191
        %s309 = sand.u32 %s181, 1
        %s310 = scalar_lea.sflag [#allocation4], %s309
        %s311 = sand.u32 %s181, 1
        %s312 = smul.addr %s311, 8
        %s313 = scalar_lea.vmem [#allocation3], %s312
        %p314 = scmp.lt.s32.totalorder %s24, 1
        %s315 = scalar_select %p314, %s24, 1
        %p316 = scmp.lt.s32.totalorder %s26, 3
        %s317 = scalar_select %p316, %s26, 3
        %p318 = scmp.lt.s32.totalorder %s25, 0
        %s319 = scalar_select %p318, %s25, 0
        %s320 = sadd.s32 %s319, %s317
        %s321 = smul.addr %s315, 4
        %s322 = sadd.s32 %s320, %s321
        %s323 = smul.addr %s322, 4
        %s324 = scalar_lea.vmem %s0, %s323
        %p325 = scmp.lt.s32.totalorder %s24, 1
        %s326 = scalar_select %p325, %s24, 1
        %p327 = scmp.lt.s32.totalorder %s26, 3
        %s328 = scalar_select %p327, %s26, 3
        %s329 = smul.addr %s326, 4
        %s330 = sadd.s32 %s328, %s329
        %s331 = smul.addr %s330, 4
        %s332 = scalar_lea.vmem %s1, %s331
        %p333 = scmp.lt.s32.totalorder %s24, 1
        %s334 = scalar_select %p333, %s24, 1
        %p335 = scmp.lt.s32.totalorder %s26, 3
        %s336 = scalar_select %p335, %s26, 3
        %s337 = smul.addr %s334, 4
        %s338 = sadd.s32 %s336, %s337
        %s339 = smul.addr %s338, 4
        %s340 = scalar_lea.vmem %s2, %s339
        %p341 = scmp.lt.s32.totalorder %s26, 3
        %s342 = scalar_select %p341, %s26, 3
        %s343 = smul.addr %s342, 4
        %s344 = scalar_lea.vmem %s3, %s343
        %p346 = scmp.eq.s32.totalorder %s26, 0
        // Predicated region
        $region41: #{wav2vec2_attention.3} parent=39 // pred_check
          %p347 = pneg %p346
        $region42: #{wav2vec2_attention.3} parent=39 // pred_check_branch
          %349 = sbr.rel (%p347) target = $region44
        $region43: #{wav2vec2_attention.3} parent=39 // pred_region
          %vm350 = vcmask 261120
          %351 = vst.msk [vmem:[#allocation2] sm:$0xff] %vm350, 0.0
        $region44: #{wav2vec2_attention.3} parent=39 // pred_fallthru
          _
        %v352 = vld [vmem:[%s324] sm:$0xf]
        %v353 = vld [vmem:[%s332] sm:$0xf]
        %v354 = vld [vmem:[%s340] sm:$0xf]
        %vm355 = vcmask 64512
        %v357 = vsel %vm355, %v352, 0
        %v360 = vsel %vm355, %v353, 0
        %362 = vmatprep.subr.bf16.mxu0 0
        %363 = vmatpush1.bf16.xpose.msra.mxu0 0
        %364 = vmatprep.subr.bf16.mxu0 0
        %365 = vmatpush1.bf16.xpose.msra.mxu0 0
        %366 = vmatprep.subr.bf16.mxu0 0
        %367 = vmatpush1.bf16.xpose.msra.mxu0 0
        %368 = vmatprep.subr.bf16.mxu0 0
        %369 = vmatpush1.bf16.xpose.msra.mxu0 0
        %370 = vmatprep.subr.bf16.mxu0 0
        %371 = vmatpush1.bf16.xpose.msra.mxu0 0
        %372 = vmatprep.subr.bf16.mxu0 0
        %373 = vmatpush1.bf16.xpose.msra.mxu0 0
        %374 = vmatprep.subr.bf16.mxu0 0
        %375 = vmatpush1.bf16.xpose.msra.mxu0 0
        %376 = vmatprep.subr.bf16.mxu0 0
        %377 = vmatpush1.bf16.xpose.msra.mxu0 %v360
        %378 = vmatprep.subr.bf16.mxu0 0
        %379 = vmatpush2.bf16.xpose.msra.mxu0 0
        %380 = vmatprep.subr.bf16.mxu0 0
        %381 = vmatpush2.bf16.xpose.msra.mxu0 0
        %382 = vmatprep.subr.bf16.mxu0 0
        %383 = vmatpush2.bf16.xpose.msra.mxu0 0
        %384 = vmatprep.subr.bf16.mxu0 0
        %385 = vmatpush2.bf16.xpose.msra.mxu0 0
        %386 = vmatprep.subr.bf16.mxu0 0
        %387 = vmatpush2.bf16.xpose.msra.mxu0 0
        %388 = vmatprep.subr.bf16.mxu0 0
        %389 = vmatpush2.bf16.xpose.msra.mxu0 0
        %390 = vmatprep.subr.bf16.mxu0 0
        %391 = vmatpush2.bf16.xpose.msra.mxu0 0
        %392 = vmatprep.subr.bf16.mxu0 0
        %393 = vmatpush2.bf16.xpose.msra.mxu0 0
        %394 = vmatprep.mubr.bf16.mxu0 0
        %395 = vmatmul.mubr.bf16.gmra.mxu0 %v357
        %v396 = vpop.f32.mrf.mxu0
        %v397 = vadd.f32 0.0, %v396
        %v398 = vpop.f32.mrf.mxu0
        %v399 = vpop.f32.mrf.mxu0
        %v400 = vpop.f32.mrf.mxu0
        %401 = vdwg.mxu0
        %v402 = vsel %vm355, %v397, -inf
        %403 = vmax.xlane.f32.xlu0 %v402
        %v404 = vpop.xlane.xlu0 %403
        %v405 = vsub.f32 %v397, %v404
        %v406 = vpow.pop %v405
        %v407 = vsel %vm355, %v406, 0.0
        %408 = vadd.xlane.f32.xlu0 %v407
        %v409 = vpop.xlane.xlu0 %408
        %v410 = vpack.c.bf16 %v406, %v406
        %v412 = vsel %vm355, %v410, 0
        %vm414 = vcmask 1043456
        %v416 = vsel %vm414, %v354, 0
        %418 = vmatprep.subr.bf16.mxu0 0
        %419 = vmatpush1.bf16.msra.mxu0 0
        %420 = vmatprep.subr.bf16.mxu0 0
        %421 = vmatpush1.bf16.msra.mxu0 0
        %422 = vmatprep.subr.bf16.mxu0 0
        %423 = vmatpush1.bf16.msra.mxu0 0
        %424 = vmatprep.subr.bf16.mxu0 0
        %425 = vmatpush1.bf16.msra.mxu0 0
        %426 = vmatprep.subr.bf16.mxu0 0
        %427 = vmatpush1.bf16.msra.mxu0 0
        %428 = vmatprep.subr.bf16.mxu0 0
        %429 = vmatpush1.bf16.msra.mxu0 0
        %430 = vmatprep.subr.bf16.mxu0 0
        %431 = vmatpush1.bf16.msra.mxu0 0
        %432 = vmatprep.subr.bf16.mxu0 0
        %433 = vmatpush1.bf16.msra.mxu0 %v416
        %434 = vmatprep.subr.bf16.mxu0 0
        %435 = vmatpush2.bf16.msra.mxu0 0
        %436 = vmatprep.subr.bf16.mxu0 0
        %437 = vmatpush2.bf16.msra.mxu0 0
        %438 = vmatprep.subr.bf16.mxu0 0
        %439 = vmatpush2.bf16.msra.mxu0 0
        %440 = vmatprep.subr.bf16.mxu0 0
        %441 = vmatpush2.bf16.msra.mxu0 0
        %442 = vmatprep.subr.bf16.mxu0 0
        %443 = vmatpush2.bf16.msra.mxu0 0
        %444 = vmatprep.subr.bf16.mxu0 0
        %445 = vmatpush2.bf16.msra.mxu0 0
        %446 = vmatprep.subr.bf16.mxu0 0
        %447 = vmatpush2.bf16.msra.mxu0 0
        %448 = vmatprep.subr.bf16.mxu0 0
        %449 = vmatpush2.bf16.msra.mxu0 0
        %450 = vmatprep.mubr.bf16.mxu0 0
        %451 = vmatmul.mubr.bf16.gmra.mxu0 %v412
        %v452 = vpop.f32.mrf.mxu0
        %v453 = vadd.f32 0.0, %v452
        %v454 = vpop.f32.mrf.mxu0
        %v455 = vpop.f32.mrf.mxu0
        %v456 = vpop.f32.mrf.mxu0
        %457 = vdwg.mxu0
        %v458 = vrcp.pop %v409
        %v459 = vmul.f32 %v453, %v458
        %v460 = vpack.c.bf16 %v459, %v459
        %v461 = vld [vmem:[#allocation2] sm:$0xff]
        %v462 = vld [vmem:[%s344] sm:$0xf]
        %v464 = vsel %vm355, %v460, 0
        %v467 = vsel %vm414, %v462, 0
        %469 = vmatprep.subr.bf16.mxu0 0
        %470 = vmatpush1.bf16.msra.mxu0 0
        %471 = vmatprep.subr.bf16.mxu0 0
        %472 = vmatpush1.bf16.msra.mxu0 0
        %473 = vmatprep.subr.bf16.mxu0 0
        %474 = vmatpush1.bf16.msra.mxu0 0
        %475 = vmatprep.subr.bf16.mxu0 0
        %476 = vmatpush1.bf16.msra.mxu0 0
        %477 = vmatprep.subr.bf16.mxu0 0
        %478 = vmatpush1.bf16.msra.mxu0 0
        %479 = vmatprep.subr.bf16.mxu0 0
        %480 = vmatpush1.bf16.msra.mxu0 0
        %481 = vmatprep.subr.bf16.mxu0 0
        %482 = vmatpush1.bf16.msra.mxu0 0
        %483 = vmatprep.subr.bf16.mxu0 0
        %484 = vmatpush1.bf16.msra.mxu0 %v467
        %485 = vmatprep.subr.bf16.mxu0 0
        %486 = vmatpush2.bf16.msra.mxu0 0
        %487 = vmatprep.subr.bf16.mxu0 0
        %488 = vmatpush2.bf16.msra.mxu0 0
        %489 = vmatprep.subr.bf16.mxu0 0
        %490 = vmatpush2.bf16.msra.mxu0 0
        %491 = vmatprep.subr.bf16.mxu0 0
        %492 = vmatpush2.bf16.msra.mxu0 0
        %493 = vmatprep.subr.bf16.mxu0 0
        %494 = vmatpush2.bf16.msra.mxu0 0
        %495 = vmatprep.subr.bf16.mxu0 0
        %496 = vmatpush2.bf16.msra.mxu0 0
        %497 = vmatprep.subr.bf16.mxu0 0
        %498 = vmatpush2.bf16.msra.mxu0 0
        %499 = vmatprep.subr.bf16.mxu0 0
        %500 = vmatpush2.bf16.msra.mxu0 0
        %501 = vmatprep.mubr.bf16.mxu0 0
        %502 = vmatmul.mubr.bf16.gmra.mxu0 %v464
        %v503 = vpop.f32.mrf.mxu0
        %v504 = vadd.f32 0.0, %v503
        %v505 = vpop.f32.mrf.mxu0
        %v506 = vpop.f32.mrf.mxu0
        %v507 = vpop.f32.mrf.mxu0
        %508 = vdwg.mxu0
        %v509 = vadd.f32 %v461, %v504
        %vm510 = vcmask 261120
        %511 = vst.msk [vmem:[#allocation2] sm:$0xff] %vm510, %v509
        %p512 = scmp.eq.s32.totalorder %s26, 3
        // Predicated region
        $region45: #{wav2vec2_attention.3} parent=39 // pred_check
          %p513 = pneg %p512
        $region46: #{wav2vec2_attention.3} parent=39 // pred_check_branch
          %515 = sbr.rel (%p513) target = $region48
        $region47: #{wav2vec2_attention.3} parent=39 // pred_region
          %v516 = vld [vmem:[#allocation2] sm:$0xff]
          %v517 = vld [vmem:[%s4] sm:$0x1]
          %v519 = vlaneseq
          %v520 = vshrl.u32 %v519, 7
          %v521 = vsub.s32 0, %v520
          %v522 = vrot.slane %v517, %v521
          %v524 = vadd.f32 %v516, %v522
          %525 = vst.msk [vmem:[%s313] sm:$0xff] %vm510, %v524
        $region48: #{wav2vec2_attention.3} parent=39 // pred_fallthru
          _
        %s526 = sand.u32 %s181, 1
        %s527 = scalar_lea.sflag [#allocation4], %s526
        %s528 = sand.u32 %s181, 1
        %s529 = smul.addr %s528, 8
        %s530 = scalar_lea.vmem [#allocation3], %s529
        // Predicated region
        $region49: #{wav2vec2_attention.3} parent=39 // pred_check
          %p531 = pneg %p191
        $region50: #{wav2vec2_attention.3} parent=39 // pred_check_branch
          %533 = sbr.rel (%p531) target = $region52
        $region51: #{wav2vec2_attention.3} parent=39 // pred_region
          %s535 = ssub.s32 128, 128
          %536 = vsyncadd %s527, %s535
          %s537 = sadd.s32 %s25, %s24
          %s538 = smul.addr %s537, 128
          %s539 = scalar_lea.hbm %s5, %s538
          %s541 = sshll.u32 %s530, 4
          %s542 = int_to_ptr.vmem [resolvable:$true] %s541
          %544 = dma.vmem_to_hbm [thread:$0]  %s542, 128, %s539, %s527
        $region52: #{wav2vec2_attention.3} parent=39 // pred_fallthru
          _
      $region40: #{wav2vec2_attention.3} parent=5 // pred_fallthru
        _
      %p545 = scmp.le.s32.totalorder 2, %s14
      // Predicated region
      $region53: #{wav2vec2_attention.3} parent=5 // pred_check
        %p546 = pneg %p545
      $region54: #{wav2vec2_attention.3} parent=5 // pred_check_branch
        %548 = sbr.rel (%p546) target = $region56
      $region55: #{wav2vec2_attention.3} parent=5 // pred_region
        %s549 = ssub.s32 %s14, 2
        // Predicated region
        $region57: #{wav2vec2_attention.3} parent=55 // pred_check
          %p550 = pneg %p197
        $region58: #{wav2vec2_attention.3} parent=55 // pred_check_branch
          %552 = sbr.rel (%p550) target = $region60
        $region59: #{wav2vec2_attention.3} parent=55 // pred_region
          %s553 = sand.u32 %s182, 1
          %s554 = scalar_lea.sflag [#allocation4], %s553
          %s555 = sand.u32 %s182, 1
          %s556 = smul.addr %s555, 8
          %s557 = scalar_lea.vmem [#allocation3], %s556
          %558 = dma.done %s554, 128
        $region60: #{wav2vec2_attention.3} parent=55 // pred_fallthru
          _
      $region56: #{wav2vec2_attention.3} parent=5 // pred_fallthru
        _
    $region6: #{wav2vec2_attention.3} parent=1 // loop_footer
      %s18 = sadd.s32 1, %s14
    $region7: #{wav2vec2_attention.3} parent=1 // loop_footer_branch
      %13 = sbr.rel target = $region3
    $region8: #{wav2vec2_attention.3} parent=1 // loop_exit
      _
    %559 = vsyncpa [#allocation4], 1
    %s560 = scalar_lea.sflag [#allocation4], 1
    %561 = vsyncpa %s560, 1

// kernel: wav2vec2_attention.2
$region0: #{wav2vec2_attention.2}
  #allocation0 [shape = 'u32[]', space=smem, size = 0x4, offset = 0x4, fixed_abs, tag = 'smem constant byte address 0x4 - core index']
  #allocation1 [shape = 'u32[144,128]{1,0:T(1,128)}', space=vmem, size = 0x12000, scoped, tag = 'internal scratch']
  %s0 = inlined_call_operand.hbm [shape: f32[2,8,32], index: 0, kind: input, shape index: {}]
  %s1 = inlined_call_operand.hbm [shape: bf16[32,96], index: 1, kind: input, shape index: {}]
  %s2 = inlined_call_operand.vmem [shape: f32[1,96], index: 2, kind: input, shape index: {}]
  %s3 = inlined_call_operand.vmem [shape: bf16[2,4,8,8], index: 3, kind: output, shape index: {0}]
  %s4 = inlined_call_operand.vmem [shape: bf16[2,4,8,8], index: 4, kind: output, shape index: {1}]
  %s5 = inlined_call_operand.vmem [shape: bf16[2,4,8,8], index: 5, kind: output, shape index: {2}]
  %6 = xla_tuple %s3, %s4, %s5
  %s7 = sld [smem:[#allocation0]]
  $region69: #{wav2vec2_attention.2} parent=0
    _
  %s9 = ssub.s32 1, %s7
  %s10 = scalar_select 0, %s9, %s7
  $region1: #{wav2vec2_attention.2} parent=0
    #allocation2 [shape = 'u8[8192]{0}', space=vmem, size = 0x2000, scoped, tag = 'input window, operand 0']
    #allocation3 [shape = 's32[2]{0}', space=sflag, size = 0x8, scoped, tag = 'scoped memory for wav2vec2_attention.2']
    #allocation4 [shape = 'u8[8192]{0}', space=vmem, size = 0x2000, scoped, tag = 'input window, operand 1, single buffered']
    #allocation5 [shape = 's32[1]{0}', space=sflag, size = 0x4, scoped, tag = 'scoped memory for wav2vec2_attention.2']
    %11 = vsyncpa [#allocation3], 0
    %s12 = scalar_lea.sflag [#allocation3], 1
    %13 = vsyncpa %s12, 0
    %14 = vsyncpa [#allocation5], 0
    loop: start=0, step=1, limit=4
    $region2: #{wav2vec2_attention.2} parent=1 // loop_pre_header
      _
    $region3: #{wav2vec2_attention.2} parent=1 // loop_header
      %s16 = sphi 0, %s20
      %p17 = scmp.ge.s32.totalorder %s16, 4
      %s23 = sphi 0, %s35
      %s24 = sphi 0, %s31
      %s25 = sphi 0, %s23
      %s26 = sphi 0, %s24
      %s27 = sphi 0, %s25
      %s28 = sphi 0, %s26
      %s40 = sphi 0, %s42
      %s43 = sphi 0, %s40
      %s44 = sphi 0, %s43
      %s60 = sphi 0, %s44
      %s64 = sphi 0, %s64
      %s66 = sphi 0, %s64
      %s67 = sphi 0, %s66
      %s81 = sphi 0, %s67
      %s85 = sphi 0, %s85
      %s87 = sphi 0, %s85
      %s88 = sphi 0, %s87
      %s102 = sphi 0, %s88
      %s110 = sphi 0, %s112
      %s113 = sphi 0, %s110
      %s114 = sphi 0, %s113
      %s130 = sphi 0, %s114
      %s138 = sphi 0, %s140
      %s141 = sphi 0, %s138
      %s142 = sphi 0, %s141
      %s158 = sphi 0, %s142
      %s166 = sphi 0, %s168
      %s169 = sphi 0, %s166
      %s170 = sphi 0, %s169
      %s186 = sphi 0, %s170
    $region4: #{wav2vec2_attention.2} parent=1 // loop_header_branch
      %19 = sbr.rel (%p17) target = $region8
    $region5: #{wav2vec2_attention.2} parent=1 // loop_body
      %s21 = ssub.s32 %s16, 1
      %s22 = ssub.s32 %s16, 2
      %s29 = sadd.s32 1, %s24
      %p30 = scmp.ge.s32.totalorder %s29, 1
      %s31 = scalar_select %p30, 0, %s29
      %s32 = sadd.s32 1, %s23
      %s33 = scalar_select %p30, %s32, %s23
      %p34 = scmp.ge.s32.totalorder %s33, 2
      %s35 = scalar_select %p34, 0, %s33
      %s36 = ssub.s32 %s23, %s35
      %s37 = ssub.s32 %s24, %s31
      %s38 = sor.u32 %s36, %s37
      %p39 = scmp.eq.s32.totalorder %s38, 0
      %s41 = sadd.s32 %s40, 1
      %s42 = scalar_select %p39, %s40, %s41
      %p45 = pneg %p39
      %p46 = scmp.eq.s32.totalorder %s16, 1
      %p47 = por %p45, %p46
      %p48 = scmp.ne.s32.totalorder %s40, %s43
      %p49 = scmp.eq.s32.totalorder %s16, 0
      %p50 = por %p48, %p49
      %p51 = scmp.ne.s32.totalorder %s40, %s43
      %p52 = scmp.eq.s32.totalorder %s21, 1
      %p53 = por %p51, %p52
      %p54 = scmp.ne.s32.totalorder %s43, %s44
      %p55 = scmp.eq.s32.totalorder %s21, 0
      %p56 = por %p54, %p55
      %p57 = scmp.ne.s32.totalorder %s43, %s44
      %p58 = scmp.eq.s32.totalorder %s22, 1
      %p59 = por %p57, %p58
      %p61 = scmp.ne.s32.totalorder %s44, %s60
      %p62 = scmp.eq.s32.totalorder %s22, 0
      %p63 = por %p61, %p62
      %s65 = sadd.s32 %s64, 1
      %p68 = scmp.eq.s32.totalorder %s16, 1
      %p69 = scmp.ne.s32.totalorder %s64, %s66
      %p70 = scmp.eq.s32.totalorder %s16, 0
      %p71 = por %p69, %p70
      %p72 = scmp.ne.s32.totalorder %s64, %s66
      %p73 = scmp.eq.s32.totalorder %s21, 1
      %p74 = por %p72, %p73
      %p75 = scmp.ne.s32.totalorder %s66, %s67
      %p76 = scmp.eq.s32.totalorder %s21, 0
      %p77 = por %p75, %p76
      %p78 = scmp.ne.s32.totalorder %s66, %s67
      %p79 = scmp.eq.s32.totalorder %s22, 1
      %p80 = por %p78, %p79
      %p82 = scmp.ne.s32.totalorder %s67, %s81
      %p83 = scmp.eq.s32.totalorder %s22, 0
      %p84 = por %p82, %p83
      %s86 = sadd.s32 %s85, 1
      %p89 = scmp.eq.s32.totalorder %s16, 1
      %p90 = scmp.ne.s32.totalorder %s85, %s87
      %p91 = scmp.eq.s32.totalorder %s16, 0
      %p92 = por %p90, %p91
      %p93 = scmp.ne.s32.totalorder %s85, %s87
      %p94 = scmp.eq.s32.totalorder %s21, 1
      %p95 = por %p93, %p94
      %p96 = scmp.ne.s32.totalorder %s87, %s88
      %p97 = scmp.eq.s32.totalorder %s21, 0
      %p98 = por %p96, %p97
      %p99 = scmp.ne.s32.totalorder %s87, %s88
      %p100 = scmp.eq.s32.totalorder %s22, 1
      %p101 = por %p99, %p100
      %p103 = scmp.ne.s32.totalorder %s88, %s102
      %p104 = scmp.eq.s32.totalorder %s22, 0
      %p105 = por %p103, %p104
      %s106 = ssub.s32 %s23, %s35
      %s107 = ssub.s32 %s24, %s31
      %s108 = sor.u32 %s106, %s107
      %p109 = scmp.eq.s32.totalorder %s108, 0
      %s111 = sadd.s32 %s110, 1
      %s112 = scalar_select %p109, %s110, %s111
      %p115 = pneg %p109
      %p116 = scmp.eq.s32.totalorder %s16, 1
      %p117 = por %p115, %p116
      %p118 = scmp.ne.s32.totalorder %s110, %s113
      %p119 = scmp.eq.s32.totalorder %s16, 0
      %p120 = por %p118, %p119
      %p121 = scmp.ne.s32.totalorder %s110, %s113
      %p122 = scmp.eq.s32.totalorder %s21, 1
      %p123 = por %p121, %p122
      %p124 = scmp.ne.s32.totalorder %s113, %s114
      %p125 = scmp.eq.s32.totalorder %s21, 0
      %p126 = por %p124, %p125
      %p127 = scmp.ne.s32.totalorder %s113, %s114
      %p128 = scmp.eq.s32.totalorder %s22, 1
      %p129 = por %p127, %p128
      %p131 = scmp.ne.s32.totalorder %s114, %s130
      %p132 = scmp.eq.s32.totalorder %s22, 0
      %p133 = por %p131, %p132
      %s134 = ssub.s32 %s23, %s35
      %s135 = ssub.s32 %s24, %s31
      %s136 = sor.u32 %s134, %s135
      %p137 = scmp.eq.s32.totalorder %s136, 0
      %s139 = sadd.s32 %s138, 1
      %s140 = scalar_select %p137, %s138, %s139
      %p143 = pneg %p137
      %p144 = scmp.eq.s32.totalorder %s16, 1
      %p145 = por %p143, %p144
      %p146 = scmp.ne.s32.totalorder %s138, %s141
      %p147 = scmp.eq.s32.totalorder %s16, 0
      %p148 = por %p146, %p147
      %p149 = scmp.ne.s32.totalorder %s138, %s141
      %p150 = scmp.eq.s32.totalorder %s21, 1
      %p151 = por %p149, %p150
      %p152 = scmp.ne.s32.totalorder %s141, %s142
      %p153 = scmp.eq.s32.totalorder %s21, 0
      %p154 = por %p152, %p153
      %p155 = scmp.ne.s32.totalorder %s141, %s142
      %p156 = scmp.eq.s32.totalorder %s22, 1
      %p157 = por %p155, %p156
      %p159 = scmp.ne.s32.totalorder %s142, %s158
      %p160 = scmp.eq.s32.totalorder %s22, 0
      %p161 = por %p159, %p160
      %s162 = ssub.s32 %s23, %s35
      %s163 = ssub.s32 %s24, %s31
      %s164 = sor.u32 %s162, %s163
      %p165 = scmp.eq.s32.totalorder %s164, 0
      %s167 = sadd.s32 %s166, 1
      %s168 = scalar_select %p165, %s166, %s167
      %p171 = pneg %p165
      %p172 = scmp.eq.s32.totalorder %s16, 1
      %p173 = por %p171, %p172
      %p174 = scmp.ne.s32.totalorder %s166, %s169
      %p175 = scmp.eq.s32.totalorder %s16, 0
      %p176 = por %p174, %p175
      %p177 = scmp.ne.s32.totalorder %s166, %s169
      %p178 = scmp.eq.s32.totalorder %s21, 1
      %p179 = por %p177, %p178
      %p180 = scmp.ne.s32.totalorder %s169, %s170
      %p181 = scmp.eq.s32.totalorder %s21, 0
      %p182 = por %p180, %p181
      %p183 = scmp.ne.s32.totalorder %s169, %s170
      %p184 = scmp.eq.s32.totalorder %s22, 1
      %p185 = por %p183, %p184
      %p187 = scmp.ne.s32.totalorder %s170, %s186
      %p188 = scmp.eq.s32.totalorder %s22, 0
      %p189 = por %p187, %p188
      %p190 = scmp.le.s32.totalorder 1, %s16
      %p191 = scmp.lt.s32.totalorder %s16, 3
      %p192 = pnand %p190, %p191
      %p193 = pneg %p192
      // Predicated region
      $region9: #{wav2vec2_attention.2} parent=5 // pred_check
        _
      $region10: #{wav2vec2_attention.2} parent=5 // pred_check_branch
        %195 = sbr.rel (%p192) target = $region12
      $region11: #{wav2vec2_attention.2} parent=5 // pred_region
        %s196 = ssub.s32 %s16, 1
        // Predicated region
        $region13: #{wav2vec2_attention.2} parent=11 // pred_check
          %p197 = pneg %p77
        $region14: #{wav2vec2_attention.2} parent=11 // pred_check_branch
          %199 = sbr.rel (%p197) target = $region16
        $region15: #{wav2vec2_attention.2} parent=11 // pred_region
          %s201 = ssub.s32 256, 256
          %202 = vsyncadd [#allocation5], %s201
          %s203 = sshll.u32 [#allocation4], 4
          %s204 = int_to_ptr.vmem [resolvable:$true] %s203
          %209 = dma.hbm_to_vmem [thread:$0]  %s1, 256, %s204, [#allocation5], 64, 64, 4
        $region16: #{wav2vec2_attention.2} parent=11 // pred_fallthru
          _
        // Predicated region
        $region17: #{wav2vec2_attention.2} parent=11 // pred_check
          %p210 = pneg %p98
        $region18: #{wav2vec2_attention.2} parent=11 // pred_check_branch
          %212 = sbr.rel (%p210) target = $region20
        $region19: #{wav2vec2_attention.2} parent=11 // pred_region
          _
        $region20: #{wav2vec2_attention.2} parent=11 // pred_fallthru
          _
      $region12: #{wav2vec2_attention.2} parent=5 // pred_fallthru
        _
      %p213 = scmp.lt.s32.totalorder %s16, 2
      // Predicated region
      $region21: #{wav2vec2_attention.2} parent=5 // pred_check
        %p214 = pneg %p213
      $region22: #{wav2vec2_attention.2} parent=5 // pred_check_branch
        %216 = sbr.rel (%p214) target = $region24
      $region23: #{wav2vec2_attention.2} parent=5 // pred_region
        // Predicated region
        $region25: #{wav2vec2_attention.2} parent=23 // pred_check
          %p217 = pneg %p50
        $region26: #{wav2vec2_attention.2} parent=23 // pred_check_branch
          %219 = sbr.rel (%p217) target = $region28
        $region27: #{wav2vec2_attention.2} parent=23 // pred_region
          %s220 = sand.u32 %s40, 1
          %s221 = scalar_lea.sflag [#allocation3], %s220
          %s222 = sand.u32 %s40, 1
          %s223 = smul.addr %s222, 8
          %s224 = scalar_lea.vmem [#allocation2], %s223
          %s226 = ssub.s32 128, 128
          %227 = vsyncadd %s221, %s226
          %s228 = sadd.s32 %s24, %s23
          %s229 = smul.addr %s228, 128
          %s230 = scalar_lea.hbm %s0, %s229
          %s232 = sshll.u32 %s224, 4
          %s233 = int_to_ptr.vmem [resolvable:$true] %s232
          %235 = dma.hbm_to_vmem [thread:$0]  %s230, 128, %s233, %s221
        $region28: #{wav2vec2_attention.2} parent=23 // pred_fallthru
          _
      $region24: #{wav2vec2_attention.2} parent=5 // pred_fallthru
        _
      %p236 = scmp.le.s32.totalorder 1, %s16
      %p237 = scmp.lt.s32.totalorder %s16, 3
      %p238 = pnand %p236, %p237
      %p239 = pneg %p238
      // Predicated region
      $region29: #{wav2vec2_attention.2} parent=5 // pred_check
        _
      $region30: #{wav2vec2_attention.2} parent=5 // pred_check_branch
        %241 = sbr.rel (%p238) target = $region32
      $region31: #{wav2vec2_attention.2} parent=5 // pred_region
        %s242 = ssub.s32 %s16, 1
        %s243 = sand.u32 %s43, 1
        %s244 = scalar_lea.sflag [#allocation3], %s243
        %s245 = sand.u32 %s43, 1
        %s246 = smul.addr %s245, 8
        %s247 = scalar_lea.vmem [#allocation2], %s246
        // Predicated region
        $region33: #{wav2vec2_attention.2} parent=31 // pred_check
          %p248 = pneg %p56
        $region34: #{wav2vec2_attention.2} parent=31 // pred_check_branch
          %250 = sbr.rel (%p248) target = $region36
        $region35: #{wav2vec2_attention.2} parent=31 // pred_region
          %251 = dma.done %s244, 128
        $region36: #{wav2vec2_attention.2} parent=31 // pred_fallthru
          _
        // Predicated region
        $region37: #{wav2vec2_attention.2} parent=31 // pred_check
          %p252 = pneg %p77
        $region38: #{wav2vec2_attention.2} parent=31 // pred_check_branch
          %254 = sbr.rel (%p252) target = $region40
        $region39: #{wav2vec2_attention.2} parent=31 // pred_region
          %255 = dma.done [#allocation5], 256
        $region40: #{wav2vec2_attention.2} parent=31 // pred_fallthru
          _
        %s256 = sand.u32 %s43, 1
        %s257 = scalar_lea.sflag [#allocation3], %s256
        %s258 = sand.u32 %s43, 1
        %s259 = smul.addr %s258, 8
        %s260 = scalar_lea.vmem [#allocation2], %s259
        %p261 = pneg %p56
        %p262 = pneg %p53
        %p263 = pneg %p77
        %p264 = pneg %p74
        %p265 = pneg %p98
        %p266 = pneg %p95
        %p267 = pneg %p126
        %p268 = pneg %p123
        %p269 = scmp.lt.s32.totalorder %s25, 1
        %s270 = scalar_select %p269, %s25, 1
        %p271 = scmp.lt.s32.totalorder %s26, 0
        %s272 = scalar_select %p271, %s26, 0
        %s273 = smul.addr %s270, 4
        %s274 = sadd.s32 %s272, %s273
        %s275 = smul.addr %s274, 4
        %s276 = scalar_lea.vmem %s3, %s275
        %p277 = pneg %p154
        %p278 = pneg %p151
        %p279 = scmp.lt.s32.totalorder %s25, 1
        %s280 = scalar_select %p279, %s25, 1
        %p281 = scmp.lt.s32.totalorder %s26, 0
        %s282 = scalar_select %p281, %s26, 0
        %s283 = smul.addr %s280, 4
        %s284 = sadd.s32 %s282, %s283
        %s285 = smul.addr %s284, 4
        %s286 = scalar_lea.vmem %s4, %s285
        %p287 = pneg %p182
        %p288 = pneg %p179
        %p289 = scmp.lt.s32.totalorder %s25, 1
        %s290 = scalar_select %p289, %s25, 1
        %p291 = scmp.lt.s32.totalorder %s26, 0
        %s292 = scalar_select %p291, %s26, 0
        %s293 = smul.addr %s290, 4
        %s294 = sadd.s32 %s292, %s293
        %s295 = smul.addr %s294, 4
        %s296 = scalar_lea.vmem %s5, %s295
        %p297 = scmp.lt.s32.totalorder %s25, 1
        %s298 = scalar_select %p297, %s25, 1
        %p299 = scmp.lt.s32.totalorder %s26, 0
        %s300 = scalar_select %p299, %s26, 0
        %s301 = smul.addr %s298, 4
        %s302 = sadd.s32 %s300, %s301
        %s303 = smul.addr %s302, 4
        %s304 = scalar_lea.vmem %s3, %s303
        %p305 = scmp.lt.s32.totalorder %s25, 1
        %s306 = scalar_select %p305, %s25, 1
        %p307 = scmp.lt.s32.totalorder %s26, 0
        %s308 = scalar_select %p307, %s26, 0
        %s309 = smul.addr %s306, 4
        %s310 = sadd.s32 %s308, %s309
        %s311 = smul.addr %s310, 4
        %s312 = scalar_lea.vmem %s4, %s311
        %p313 = scmp.lt.s32.totalorder %s25, 1
        %s314 = scalar_select %p313, %s25, 1
        %p315 = scmp.lt.s32.totalorder %s26, 0
        %s316 = scalar_select %p315, %s26, 0
        %s317 = smul.addr %s314, 4
        %s318 = sadd.s32 %s316, %s317
        %s319 = smul.addr %s318, 4
        %s320 = scalar_lea.vmem %s5, %s319
        %v322 = vld [vmem:[%s247] sm:$0xff]
        %v323 = vpack.c.bf16 %v322, %v322
        %v324 = vld [vmem:[#allocation4] sm:$0xf]
        %v325 = vld [vmem:[#allocation4 + $0x4] sm:$0xf]
        %v326 = vld [vmem:[#allocation4 + $0x8] sm:$0xf]
        %v327 = vld [vmem:[#allocation4 + $0xc] sm:$0xf]
        %v328 = vld [vmem:[%s2] sm:$0x1]
        %v330 = vlaneseq
        %v331 = vshrl.u32 %v330, 7
        %v332 = vsub.s32 0, %v331
        %v333 = vrot.slane %v328, %v332
        %v339 = vunpack.c.l.b16 %v324
        %v340 = vunpack.c.l.b16 %v325
        %v341 = vunpack.c.l.b16 %v326
        %v342 = vunpack.c.l.b16 %v327
        %v343 = vpack.c.b16 %v340, %v339
        %v344 = vpack.c.b16 %v342, %v341
        %vm347 = vcmask 261120
        %v349 = vsel %vm347, %v323, 0
        %351 = vmatprep.subr.bf16.mxu0 0
        %352 = vmatpush1.bf16.msra.mxu0 0
        %353 = vmatprep.subr.bf16.mxu0 0
        %354 = vmatpush1.bf16.msra.mxu0 0
        %355 = vmatprep.subr.bf16.mxu0 0
        %356 = vmatpush1.bf16.msra.mxu0 0
        %357 = vmatprep.subr.bf16.mxu0 0
        %358 = vmatpush1.bf16.msra.mxu0 0
        %359 = vmatprep.subr.bf16.mxu0 0
        %360 = vmatpush1.bf16.msra.mxu0 0
        %361 = vmatprep.subr.bf16.mxu0 0
        %362 = vmatpush1.bf16.msra.mxu0 0
        %363 = vmatprep.subr.bf16.mxu0 0
        %364 = vmatpush1.bf16.msra.mxu0 %v344
        %365 = vmatprep.subr.bf16.mxu0 0
        %366 = vmatpush1.bf16.msra.mxu0 %v343
        %367 = vmatprep.subr.bf16.mxu0 0
        %368 = vmatpush2.bf16.msra.mxu0 0
        %369 = vmatprep.subr.bf16.mxu0 0
        %370 = vmatpush2.bf16.msra.mxu0 0
        %371 = vmatprep.subr.bf16.mxu0 0
        %372 = vmatpush2.bf16.msra.mxu0 0
        %373 = vmatprep.subr.bf16.mxu0 0
        %374 = vmatpush2.bf16.msra.mxu0 0
        %375 = vmatprep.subr.bf16.mxu0 0
        %376 = vmatpush2.bf16.msra.mxu0 0
        %377 = vmatprep.subr.bf16.mxu0 0
        %378 = vmatpush2.bf16.msra.mxu0 0
        %379 = vmatprep.subr.bf16.mxu0 0
        %380 = vmatpush2.bf16.msra.mxu0 0
        %381 = vmatprep.subr.bf16.mxu0 0
        %382 = vmatpush2.bf16.msra.mxu0 0
        %383 = vmatprep.mubr.bf16.mxu0 0
        %384 = vmatmul.mubr.bf16.gmra.mxu0 %v349
        %v385 = vpop.f32.mrf.mxu0
        %v386 = vadd.f32 %v333, %v385
        %v387 = vpop.f32.mrf.mxu0
        %v388 = vpop.f32.mrf.mxu0
        %v389 = vpop.f32.mrf.mxu0
        %390 = vdwg.mxu0
        %v391 = vpack.c.bf16 %v386, %v386
        %vm392 = vcmask 60416
        %393 = vst.msk [vmem:[%s304] sm:$0xf] %vm392, %v391
        %v395 = vunpack.c.l.b16 %v391
        %v396 = vpack.c.b16 %v395, %v395
        %397 = vrot.lane.b32.xlu0 %v396, 96
        %v398 = vpop.permute.xlu0 %397
        %400 = vst.msk [vmem:[%s312] sm:$0xf] %vm392, %v398
        %401 = vrot.lane.b32.xlu0 %v396, 64
        %v402 = vpop.permute.xlu0 %401
        %404 = vst.msk [vmem:[%s320] sm:$0xf] %vm392, %v402
        %405 = vrot.lane.b32.xlu0 %v396, 120
        %v406 = vpop.permute.xlu0 %405
        %s408 = scalar_lea.vmem %s304, 4
        %409 = vst.msk [vmem:[%s408] sm:$0xf] %vm392, %v406
        %410 = vrot.lane.b32.xlu0 %v396, 88
        %v411 = vpop.permute.xlu0 %410
        %s413 = scalar_lea.vmem %s312, 4
        %414 = vst.msk [vmem:[%s413] sm:$0xf] %vm392, %v411
        %415 = vrot.lane.b32.xlu0 %v396, 56
        %v416 = vpop.permute.xlu0 %415
        %s418 = scalar_lea.vmem %s320, 4
        %419 = vst.msk [vmem:[%s418] sm:$0xf] %vm392, %v416
        %420 = vrot.lane.b32.xlu0 %v396, 112
        %v421 = vpop.permute.xlu0 %420
        %s423 = scalar_lea.vmem %s304, 8
        %424 = vst.msk [vmem:[%s423] sm:$0xf] %vm392, %v421
        %425 = vrot.lane.b32.xlu0 %v396, 80
        %v426 = vpop.permute.xlu0 %425
        %s428 = scalar_lea.vmem %s312, 8
        %429 = vst.msk [vmem:[%s428] sm:$0xf] %vm392, %v426
        %430 = vrot.lane.b32.xlu0 %v396, 48
        %v431 = vpop.permute.xlu0 %430
        %s433 = scalar_lea.vmem %s320, 8
        %434 = vst.msk [vmem:[%s433] sm:$0xf] %vm392, %v431
        %435 = vrot.lane.b32.xlu0 %v396, 104
        %v436 = vpop.permute.xlu0 %435
        %s438 = scalar_lea.vmem %s304, 12
        %439 = vst.msk [vmem:[%s438] sm:$0xf] %vm392, %v436
        %440 = vrot.lane.b32.xlu0 %v396, 72
        %v441 = vpop.permute.xlu0 %440
        %s443 = scalar_lea.vmem %s312, 12
        %444 = vst.msk [vmem:[%s443] sm:$0xf] %vm392, %v441
        %445 = vrot.lane.b32.xlu0 %v396, 40
        %v446 = vpop.permute.xlu0 %445
        %s448 = scalar_lea.vmem %s320, 12
        %449 = vst.msk [vmem:[%s448] sm:$0xf] %vm392, %v446
        %p450 = scmp.lt.s32.totalorder %s25, 1
        %s451 = scalar_select %p450, %s25, 1
        %p452 = scmp.lt.s32.totalorder %s26, 0
        %s453 = scalar_select %p452, %s26, 0
        %s454 = smul.addr %s451, 4
        %s455 = sadd.s32 %s453, %s454
        %s456 = smul.addr %s455, 4
        %s457 = scalar_lea.vmem %s3, %s456
        %p458 = scmp.lt.s32.totalorder %s25, 1
        %s459 = scalar_select %p458, %s25, 1
        %p460 = scmp.lt.s32.totalorder %s26, 0
        %s461 = scalar_select %p460, %s26, 0
        %s462 = smul.addr %s459, 4
        %s463 = sadd.s32 %s461, %s462
        %s464 = smul.addr %s463, 4
        %s465 = scalar_lea.vmem %s4, %s464
        %p466 = scmp.lt.s32.totalorder %s25, 1
        %s467 = scalar_select %p466, %s25, 1
        %p468 = scmp.lt.s32.totalorder %s26, 0
        %s469 = scalar_select %p468, %s26, 0
        %s470 = smul.addr %s467, 4
        %s471 = sadd.s32 %s469, %s470
        %s472 = smul.addr %s471, 4
        %s473 = scalar_lea.vmem %s5, %s472
        // Predicated region
        $region41: #{wav2vec2_attention.2} parent=31 // pred_check
          %p474 = pneg %p123
        $region42: #{wav2vec2_attention.2} parent=31 // pred_check_branch
          %476 = sbr.rel (%p474) target = $region44
        $region43: #{wav2vec2_attention.2} parent=31 // pred_region
          _
        $region44: #{wav2vec2_attention.2} parent=31 // pred_fallthru
          _
        // Predicated region
        $region45: #{wav2vec2_attention.2} parent=31 // pred_check
          %p477 = pneg %p151
        $region46: #{wav2vec2_attention.2} parent=31 // pred_check_branch
          %479 = sbr.rel (%p477) target = $region48
        $region47: #{wav2vec2_attention.2} parent=31 // pred_region
          _
        $region48: #{wav2vec2_attention.2} parent=31 // pred_fallthru
          _
        // Predicated region
        $region49: #{wav2vec2_attention.2} parent=31 // pred_check
          %p480 = pneg %p179
        $region50: #{wav2vec2_attention.2} parent=31 // pred_check_branch
          %482 = sbr.rel (%p480) target = $region52
        $region51: #{wav2vec2_attention.2} parent=31 // pred_region
          _
        $region52: #{wav2vec2_attention.2} parent=31 // pred_fallthru
          _
      $region32: #{wav2vec2_attention.2} parent=5 // pred_fallthru
        _
      %p483 = scmp.le.s32.totalorder 2, %s16
      // Predicated region
      $region53: #{wav2vec2_attention.2} parent=5 // pred_check
        %p484 = pneg %p483
      $region54: #{wav2vec2_attention.2} parent=5 // pred_check_branch
        %486 = sbr.rel (%p484) target = $region56
      $region55: #{wav2vec2_attention.2} parent=5 // pred_region
        %s487 = ssub.s32 %s16, 2
        // Predicated region
        $region57: #{wav2vec2_attention.2} parent=55 // pred_check
          %p488 = pneg %p129
        $region58: #{wav2vec2_attention.2} parent=55 // pred_check_branch
          %490 = sbr.rel (%p488) target = $region60
        $region59: #{wav2vec2_attention.2} parent=55 // pred_region
          %p491 = scmp.lt.s32.totalorder %s27, 1
          %s492 = scalar_select %p491, %s27, 1
          %p493 = scmp.lt.s32.totalorder %s28, 0
          %s494 = scalar_select %p493, %s28, 0
          %s495 = smul.addr %s492, 4
          %s496 = sadd.s32 %s494, %s495
          %s497 = smul.addr %s496, 4
          %s498 = scalar_lea.vmem %s3, %s497
        $region60: #{wav2vec2_attention.2} parent=55 // pred_fallthru
          _
        // Predicated region
        $region61: #{wav2vec2_attention.2} parent=55 // pred_check
          %p499 = pneg %p157
        $region62: #{wav2vec2_attention.2} parent=55 // pred_check_branch
          %501 = sbr.rel (%p499) target = $region64
        $region63: #{wav2vec2_attention.2} parent=55 // pred_region
          %p502 = scmp.lt.s32.totalorder %s27, 1
          %s503 = scalar_select %p502, %s27, 1
          %p504 = scmp.lt.s32.totalorder %s28, 0
          %s505 = scalar_select %p504, %s28, 0
          %s506 = smul.addr %s503, 4
          %s507 = sadd.s32 %s505, %s506
          %s508 = smul.addr %s507, 4
          %s509 = scalar_lea.vmem %s4, %s508
        $region64: #{wav2vec2_attention.2} parent=55 // pred_fallthru
          _
        // Predicated region
        $region65: #{wav2vec2_attention.2} parent=55 // pred_check
          %p510 = pneg %p185
        $region66: #{wav2vec2_attention.2} parent=55 // pred_check_branch
          %512 = sbr.rel (%p510) target = $region68
        $region67: #{wav2vec2_attention.2} parent=55 // pred_region
          %p513 = scmp.lt.s32.totalorder %s27, 1
          %s514 = scalar_select %p513, %s27, 1
          %p515 = scmp.lt.s32.totalorder %s28, 0
          %s516 = scalar_select %p515, %s28, 0
          %s517 = smul.addr %s514, 4
          %s518 = sadd.s32 %s516, %s517
          %s519 = smul.addr %s518, 4
          %s520 = scalar_lea.vmem %s5, %s519
        $region68: #{wav2vec2_attention.2} parent=55 // pred_fallthru
          _
      $region56: #{wav2vec2_attention.2} parent=5 // pred_fallthru
        _
    $region6: #{wav2vec2_attention.2} parent=1 // loop_footer
      %s20 = sadd.s32 1, %s16
    $region7: #{wav2vec2_attention.2} parent=1 // loop_footer_branch
      %15 = sbr.rel target = $region3
    $region8: #{wav2vec2_attention.2} parent=1 // loop_exit
      _
    %521 = vsyncpa [#allocation3], 1
    %s522 = scalar_lea.sflag [#allocation3], 1
    %523 = vsyncpa %s522, 1
    %524 = vsyncpa [#allocation5], 1

</llo_original>
